<compile_context>
chip_gen: v6e
topology: v6e:2x2x1
jax: 0.10.0
libtpu: 0.0.40
codegen_flags: <defaults>
</compile_context>

<pallas_src>
import functools

import jax
import jax.numpy as jnp
from jax.experimental import pallas as pl
from jax.experimental.pallas import tpu as pltpu

# Geometry fixed by the module: nn.Linear(784, F) after the two convs implies
# conv1 -> 9x9x16 (k=3, stride 2) and conv2 -> 7x7x16 (k=3, stride 1), i.e. 20x20 input.
KH = KW = 3
OH1 = OW1 = 9          # conv1 output spatial
OH2 = OW2 = 7          # conv2 output spatial
C2 = 16                # channels of both convs
LANE1 = OW1 * C2       # 144 : conv1 activation lanes, ordered (iw, c)
LANE2 = OW2 * C2       # 112 : conv2 activation lanes, ordered (ow, c)


def _round_up(n, m):
    return ((n + m - 1) // m) * m


# --------------------------------------------------------------------------- #
#  Fused, batched encoder kernel: conv1 + conv2 + enc_fc, intermediates in VMEM.
#  Row layout inside a block of nb images: row = stage_row * nb + sample.
# --------------------------------------------------------------------------- #
def _encoder_kernel(cols_ref, w1_ref, b1_ref, w2_ref, b2_ref, wf_ref, bf_ref,
                    o_ref, *, nb):
    """cols_ref : (9*nb, 9*KH*KW*C) bf16, row=(ih, n), lane=(ow, kh, kw, c)
       w1_ref   : (9*KH*KW*C, 144)  bf16, block-diag over ow of conv1 im2col weight
       w2_ref   : (3, 144, 112)     bf16, per-kh banded weight (kw folded in)
       wf_ref   : (7, 112, F)       bf16, encoder FC regrouped per conv2 row oh
       o_ref    : (nb, F)           features (one dense store per block)
    """
    # conv1: one matmul for the whole block, M = 9*nb rows.
    h1 = jnp.dot(cols_ref[...], w1_ref[...], preferred_element_type=jnp.float32)
    h1 = jnp.maximum(h1 + b1_ref[...], 0.0)               # (9*nb, 144) f32, rows (ih, n)

    # conv2: 3 banded matmuls (one per kh), M = 7*nb rows; rows become (oh2, n).
    acc = jnp.dot(h1[0:OH2 * nb, :].astype(jnp.bfloat16), w2_ref[0],
                  preferred_element_type=jnp.float32)
    for i in range(1, KH):
        a = h1[i * nb:(i + OH2) * nb, :].astype(jnp.bfloat16)   # 8-aligned slice
        acc = acc + jnp.dot(a, w2_ref[i], preferred_element_type=jnp.float32)
    h2 = jnp.maximum(acc + b2_ref[...], 0.0)               # (7*nb, 112) f32

    # encoder FC: 7 accumulating matmuls, M = nb rows each (batched over samples).
    phi = jnp.dot(h2[0:nb, :].astype(jnp.bfloat16), wf_ref[0],
                  preferred_element_type=jnp.float32)
    for oh in range(1, OH2):
        a = h2[oh * nb:(oh + 1) * nb, :].astype(jnp.bfloat16)
        phi = phi + jnp.dot(a, wf_ref[oh], preferred_element_type=jnp.float32)

    o_ref[...] = (phi + bf_ref[...]).astype(o_ref.dtype)   # (nb, F) dense store


def _im2col_conv1_blocked(x, nb):
    """x: (N, 20, 20, C), N % nb == 0 -> (N*9, 9*KH*KW*C) bf16 with rows ordered
    (block, ih, sample_in_block) so each grid step reads one contiguous 2-D tile."""
    n, _, _, c = x.shape
    taps = [x[:, i:i + 2 * OH1:2, j:j + 2 * OW1:2, :]
            for i in range(KH) for j in range(KW)]              # each (N, 9, 9, C)
    cols = jnp.concatenate(taps, axis=-1)                       # (N, 9, 9, 9*C)
    cols = cols.reshape(n, OH1, OW1 * KH * KW * c)              # lane=(ow, kh, kw, c)
    g = n // nb
    cols = cols.reshape(g, nb, OH1, OW1 * KH * KW * c)
    cols = jnp.transpose(cols, (0, 2, 1, 3))                    # (G, ih, n_in_block, lanes)
    return cols.reshape(g * OH1 * nb, OW1 * KH * KW * c).astype(jnp.bfloat16)


def _choose_nb(n_img):
    return min(_round_up(max(n_img, 1), 8), 64)


def _encode(enc, images):
    """images: (n_img, 20, 20, C) -> (n_img, F) float32. One gridded pallas_call."""
    n_img = images.shape[0]
    feat = enc["bf"].shape[1]
    nb = _choose_nb(n_img)
    n_pad = _round_up(n_img, nb)
    if n_pad != n_img:
        pad = jnp.zeros((n_pad - n_img,) + images.shape[1:], images.dtype)
        images = jnp.concatenate([images, pad], axis=0)
    cols = _im2col_conv1_blocked(images, nb)
    g = n_pad // nb
    kern = functools.partial(_encoder_kernel, nb=nb)
    feats = pl.pallas_call(
        kern,
        out_shape=jax.ShapeDtypeStruct((n_pad, feat), jnp.float32),
        grid=(g,),
        in_specs=[
            pl.BlockSpec((OH1 * nb, cols.shape[1]), lambda i: (i, 0)),
            pl.BlockSpec(enc["W1w"].shape, lambda i: (0, 0)),
            pl.BlockSpec(enc["b1w"].shape, lambda i: (0, 0)),
            pl.BlockSpec(enc["W2w"].shape, lambda i: (0, 0, 0)),
            pl.BlockSpec(enc["b2w"].shape, lambda i: (0, 0)),
            pl.BlockSpec(enc["Wfw"].shape, lambda i: (0, 0, 0)),
            pl.BlockSpec(enc["bf"].shape, lambda i: (0, 0)),
        ],
        out_specs=pl.BlockSpec((nb, feat), lambda i: (i, 0)),
        compiler_params=pltpu.CompilerParams(dimension_semantics=("parallel",)),
    )(cols, enc["W1w"], enc["b1w"], enc["W2w"], enc["b2w"], enc["Wfw"], enc["bf"])
    return feats[:n_img]


# --------------------------------------------------------------------------- #
#  Fused MLP kernel: multi-input first layer (no HBM concat), optional additive
#  term (action row-gather for dynamics), remaining layers fused in-register.
# --------------------------------------------------------------------------- #
def _mlp_kernel(*refs, n_in, has_add, n_layers):
    pos = 0
    x_refs = refs[pos:pos + n_in]; pos += n_in
    add_ref = refs[pos] if has_add else None
    if has_add:
        pos += 1
    w0_refs = refs[pos:pos + n_in]; pos += n_in
    b0_ref = refs[pos]; pos += 1
    rest = refs[pos:-1]
    o_ref = refs[-1]

    acc = jnp.dot(x_refs[0][...].astype(jnp.bfloat16), w0_refs[0][...],
                  preferred_element_type=jnp.float32)
    for t in range(1, n_in):
        acc = acc + jnp.dot(x_refs[t][...].astype(jnp.bfloat16), w0_refs[t][...],
                            preferred_element_type=jnp.float32)
    acc = acc + b0_ref[...]
    if has_add:
        acc = acc + add_ref[...]
    h = jnp.maximum(acc, 0.0) if n_layers > 1 else acc     # rlpyt MlpModel: plain last layer
    for l in range(1, n_layers):
        w_ref, b_ref = rest[2 * (l - 1)], rest[2 * (l - 1) + 1]
        y = jnp.dot(h.astype(jnp.bfloat16), w_ref[...],
                    preferred_element_type=jnp.float32) + b_ref[...]
        h = jnp.maximum(y, 0.0) if l < n_layers - 1 else y
    o_ref[...] = h.astype(o_ref.dtype)


def _choose_block_m(m8):
    """m8 is a multiple of 8. Cap blocks at 256 rows so m >= 512 gives grid >= 2
    (both TCs on v7x) and VMEM stays bounded for large ragged batches."""
    if m8 <= 256:
        return m8
    g = max(2, -(-m8 // 256))
    return _round_up(-(-m8 // g), 8)


def _fused_mlp(xs, add, mlp):
    """xs: list of (M, K_t) arrays (any float dtype, cast to bf16 in-kernel);
    add: optional (M, N0) f32 added after the first matmul; mlp: param dict."""
    m = xs[0].shape[0]
    m8 = _round_up(m, 8)
    bm = _choose_block_m(m8)
    m_pad = _round_up(m8, bm)
    grid = m_pad // bm

    def pad_rows(a):
        if a.shape[0] == m_pad:
            return a
        z = jnp.zeros((m_pad - a.shape[0],) + a.shape[1:], a.dtype)
        return jnp.concatenate([a, z], axis=0)

    args, in_specs = [], []
    for xv in xs:
        args.append(pad_rows(xv))
        in_specs.append(pl.BlockSpec((bm, xv.shape[1]), lambda i: (i, 0)))
    has_add = add is not None
    if has_add:
        args.append(pad_rows(add.astype(jnp.float32)))
        in_specs.append(pl.BlockSpec((bm, add.shape[1]), lambda i: (i, 0)))
    for w in mlp["w_first"]:
        args.append(w)
        in_specs.append(pl.BlockSpec(w.shape, lambda i: (0, 0)))
    args.append(mlp["b0"])
    in_specs.append(pl.BlockSpec(mlp["b0"].shape, lambda i: (0, 0)))
    for w, b in mlp["rest"]:
        args.append(w); in_specs.append(pl.BlockSpec(w.shape, lambda i: (0, 0)))
        args.append(b); in_specs.append(pl.BlockSpec(b.shape, lambda i: (0, 0)))

    n_layers = 1 + len(mlp["rest"])
    n_out = mlp["rest"][-1][0].shape[1] if mlp["rest"] else mlp["w_first"][0].shape[1]
    kern = functools.partial(_mlp_kernel, n_in=len(xs), has_add=has_add,
                             n_layers=n_layers)
    out = pl.pallas_call(
        kern,
        out_shape=jax.ShapeDtypeStruct((m_pad, n_out), jnp.float32),
        grid=(grid,),
        in_specs=in_specs,
        out_specs=pl.BlockSpec((bm, n_out), lambda i: (i, 0)),
        compiler_params=pltpu.CompilerParams(dimension_semantics=("parallel",)),
    )(*args)
    return out[:m]


# --------------------------------------------------------------------------- #
#  Parameter construction (PyTorch-equivalent init, kernel-friendly layouts).
# --------------------------------------------------------------------------- #
def _lin_init(key, fan_in, fan_out):
    kw_, kb = jax.random.split(key)
    lim = 1.0 / float(fan_in) ** 0.5
    w = jax.random.uniform(kw_, (fan_in, fan_out), jnp.float32, -lim, lim)
    b = jax.random.uniform(kb, (fan_out,), jnp.float32, -lim, lim)
    return w, b


def _conv_init(key, oc, ic, kh, kw_):
    kk, kb = jax.random.split(key)
    fan_in = ic * kh * kw_
    lim = 1.0 / float(fan_in) ** 0.5
    w = jax.random.uniform(kk, (oc, ic, kh, kw_), jnp.float32, -lim, lim)
    b = jax.random.uniform(kb, (oc,), jnp.float32, -lim, lim)
    return w, b


def _as_rest_layer(w, b):
    return (w.astype(jnp.bfloat16), b.reshape(1, -1).astype(jnp.float32))


def _encoder_params(key, in_c, feature_size):
    k1, k2, k3 = jax.random.split(key, 3)
    w1_pt, b1 = _conv_init(k1, C2, in_c, KH, KW)                 # (16, c, 3, 3)
    w2_pt, b2 = _conv_init(k2, C2, C2, KH, KW)                   # (16, 16, 3, 3)
    wf, bf = _lin_init(k3, C2 * OH2 * OW2, feature_size)         # (784, F), rows NCHW order

    # conv1: im2col weight (rows ordered (kh, kw, ic)), block-diagonal over ow1.
    w1col = jnp.transpose(w1_pt, (2, 3, 1, 0)).reshape(KH * KW * in_c, C2)
    w1w = jnp.kron(jnp.eye(OW1, dtype=jnp.float32), w1col)       # (9*9c, 144)
    b1w = jnp.tile(b1, OW1).reshape(1, LANE1)

    # conv2: fold the kw taps into 3 banded (144, 112) weights, one per kh.
    banded = []
    for i in range(KH):
        blk = jnp.zeros((LANE1, LANE2), jnp.float32)
        for j in range(KW):
            p_j = jnp.zeros((OW1, OW2), jnp.float32).at[
                jnp.arange(OW2) + j, jnp.arange(OW2)].set(1.0)   # iw == ow + j
            w2m = jnp.transpose(w2_pt[:, :, i, j])               # (ic, oc)
            blk = blk + jnp.kron(p_j, w2m)
        banded.append(blk)
    w2w = jnp.stack(banded, axis=0)                              # (3, 144, 112)
    b2w = jnp.tile(b2, OW2).reshape(1, LANE2)

    # encoder FC: fold the nn.Flatten-on-NCHW permutation into the weight rows,
    # regrouped per conv2 output row oh with lanes ordered (ow, c) -> (7, 112, F).
    wfw = jnp.transpose(wf.reshape(C2, OH2, OW2, feature_size), (1, 2, 0, 3))
    wfw = wfw.reshape(OH2, LANE2, feature_size)

    return dict(
        W1w=w1w.astype(jnp.bfloat16), b1w=b1w.astype(jnp.float32),
        W2w=w2w.astype(jnp.bfloat16), b2w=b2w.astype(jnp.float32),
        Wfw=wfw.astype(jnp.bfloat16), bf=bf.reshape(1, feature_size).astype(jnp.float32),
    )


def init_params(key, image_shape, output_size, feature_size, dyn_hidden, dsr_hidden):
    h, w, c = image_shape
    assert (h - KH) // 2 + 1 == OH1 and (w - KW) // 2 + 1 == OW1, \
        "the module's Linear(784, F) requires a 20x20 input image"
    keys = iter(jax.random.split(key, 16))
    p = {}
    p["encoder"] = _encoder_params(next(keys), c, feature_size)

    # inverse: Linear(2F, A); split rows into x / next_x blocks (no concat at run
    # time) and pad the output to 128 lanes for a dense store (sliced outside).
    wi, bi = _lin_init(next(keys), feature_size * 2, output_size)
    out_pad = _round_up(output_size, 128)
    wi_p = jnp.zeros((feature_size * 2, out_pad), jnp.float32).at[:, :output_size].set(wi)
    bi_p = jnp.zeros((out_pad,), jnp.float32).at[:output_size].set(bi)
    p["inverse"] = dict(
        w_first=[wi_p[:feature_size].astype(jnp.bfloat16),
                 wi_p[feature_size:].astype(jnp.bfloat16)],
        b0=bi_p.reshape(1, -1), rest=[])

    # dynamics MLP: input = concat([phi, onehot(action)]); the action block of the
    # first-layer weight is kept f32 as a row-gather table added after the matmul.
    dyn_sizes = [feature_size + output_size] + list(dyn_hidden) + [feature_size]
    w0, b0 = _lin_init(next(keys), dyn_sizes[0], dyn_sizes[1])
    p["dyn_wact"] = w0[feature_size:].astype(jnp.float32)        # (A, H0)
    p["dynamics"] = dict(
        w_first=[w0[:feature_size].astype(jnp.bfloat16)],
        b0=b0.reshape(1, -1),
        rest=[_as_rest_layer(*_lin_init(next(keys), dyn_sizes[i], dyn_sizes[i + 1]))
              for i in range(1, len(dyn_sizes) - 1)])

    dsr_sizes = [feature_size] + list(dsr_hidden) + [feature_size]
    w0d, b0d = _lin_init(next(keys), dsr_sizes[0], dsr_sizes[1])
    p["dsr"] = dict(
        w_first=[w0d.astype(jnp.bfloat16)],
        b0=b0d.reshape(1, -1),
        rest=[_as_rest_layer(*_lin_init(next(keys), dsr_sizes[i], dsr_sizes[i + 1]))
              for i in range(1, len(dsr_sizes) - 1)])

    # q_estimate is declared by the module but never used in forward(); keep params only.
    p["q_estimate"] = _lin_init(next(keys), feature_size, 1)
    p["onehot"] = jnp.eye(output_size, dtype=jnp.float32)
    return p


# --------------------------------------------------------------------------- #
#  Forward (same mode semantics as FeatureDSRModel.forward).
# --------------------------------------------------------------------------- #
def feature_dsr_forward(params, x, next_x=None, action=None, mode=None):
    if mode == "inverse":
        out = _fused_mlp([x, next_x], None, params["inverse"])   # split-weight, no concat
        return out[:, :params["onehot"].shape[0]]                # slice back to output_size
    elif mode == "encode":
        b = x.shape[0]
        both = jnp.concatenate([x, next_x], axis=0)              # one kernel for x and next_x
        feats = _encode(params["encoder"], both)
        return feats[:b], feats[b:]
    elif mode == "dynamics":
        add = jnp.take(params["dyn_wact"], action, axis=0)       # one-hot matmul -> row gather
        return _fused_mlp([x], add, params["dynamics"])
    elif mode == "dsr":
        return _fused_mlp([x], None, params["dsr"])
    else:
        raise ValueError("Invalid mode!")


# ---------------------------------- Main ------------------------------------ #
if __name__ == "__main__":
    image_shape = (20, 20, 3)      # (h, w, c); 20x20 required by Linear(784, F)
    output_size = 6
    feature_size = 128             # lane-dense feature width (module default is 512)
    dyn_hidden = [128]             # stands in for dynamics_params / dsr_params fc_sizes
    dsr_hidden = [128]

    root = jax.random.PRNGKey(0)
    kparam, kx, knx, kf1, kf2, ka = jax.random.split(root, 6)
    params = init_params(kparam, image_shape, output_size, feature_size,
                         dyn_hidden, dsr_hidden)

    B = 2
    img = jax.random.uniform(kx, (B,) + image_shape, jnp.float32)
    next_img = jax.random.uniform(knx, (B,) + image_shape, jnp.float32)
    feats = jax.random.normal(kf1, (B, feature_size), jnp.float32)
    next_feats = jax.random.normal(kf2, (B, feature_size), jnp.float32)
    action = jax.random.randint(ka, (B,), 0, output_size)

    fwd = jax.jit(feature_dsr_forward, static_argnames=("mode",))

    phi, phi_next = fwd(params, img, next_img, mode="encode")
    inv = fwd(params, feats, next_feats, mode="inverse")
    dyn = fwd(params, feats, action=action, mode="dynamics")
    dsr = fwd(params, feats, mode="dsr")

    for out in (phi, phi_next, inv, dyn, dsr):
        jax.block_until_ready(out)

    assert phi.shape == (B, feature_size) and phi_next.shape == (B, feature_size)
    assert inv.shape == (B, output_size)
    assert dyn.shape == (B, feature_size)
    assert dsr.shape == (B, feature_size)
    print("KERNEL_OK")
</pallas_src>

<mosaic_0001>
module attributes {stable_mosaic.version = 11 : i64} {
  func.func @_encoder_kernel(%arg0: i32, %arg1: memref<72x243xbf16, #tpu.memory_space<vmem>>, %arg2: memref<243x144xbf16, #tpu.memory_space<vmem>>, %arg3: memref<1x144xf32, #tpu.memory_space<vmem>>, %arg4: memref<3x144x112xbf16, #tpu.memory_space<vmem>>, %arg5: memref<1x112xf32, #tpu.memory_space<vmem>>, %arg6: memref<7x112x128xbf16, #tpu.memory_space<vmem>>, %arg7: memref<1x128xf32, #tpu.memory_space<vmem>>, %arg8: memref<8x128xf32, #tpu.memory_space<vmem>>) attributes {dimension_semantics = [#tpu.dimension_semantics<parallel>], iteration_bounds = array<i64: 1>, scalar_prefetch = 0 : i64, scratch_operands = 0 : i64, tpu.core_type = #tpu.core_type<tc>, window_params = [{transform_indices = @transform_0, window_bounds = array<i64: 72, 243>}, {pipeline_mode = #tpu.pipeline_mode<synchronous>, transform_indices = @transform_1, window_bounds = array<i64: 243, 144>}, {pipeline_mode = #tpu.pipeline_mode<synchronous>, transform_indices = @transform_2, window_bounds = array<i64: 1, 144>}, {pipeline_mode = #tpu.pipeline_mode<synchronous>, transform_indices = @transform_3, window_bounds = array<i64: 3, 144, 112>}, {pipeline_mode = #tpu.pipeline_mode<synchronous>, transform_indices = @transform_4, window_bounds = array<i64: 1, 112>}, {pipeline_mode = #tpu.pipeline_mode<synchronous>, transform_indices = @transform_5, window_bounds = array<i64: 7, 112, 128>}, {pipeline_mode = #tpu.pipeline_mode<synchronous>, transform_indices = @transform_6, window_bounds = array<i64: 1, 128>}, {transform_indices = @transform_7, window_bounds = array<i64: 8, 128>}]} {
    %c0 = arith.constant 0 : index
    %c0_0 = arith.constant 0 : index
    %0 = vector.load %arg1[%c0, %c0_0] : memref<72x243xbf16, #tpu.memory_space<vmem>>, vector<72x243xbf16>
    %c0_1 = arith.constant 0 : index
    %c0_2 = arith.constant 0 : index
    %1 = vector.load %arg2[%c0_1, %c0_2] : memref<243x144xbf16, #tpu.memory_space<vmem>>, vector<243x144xbf16>
    %cst = arith.constant dense<0.000000e+00> : vector<72x144xf32>
    %2 = tpu.matmul %0, %1, %cst {dimension_numbers = #tpu.dot_dimension_numbers<[1], [0], [0], [1], [0, 0, 1, 1], [], []>} : vector<72x243xbf16>, vector<243x144xbf16>, vector<72x144xf32> -> vector<72x144xf32>
    %c0_3 = arith.constant 0 : index
    %c0_4 = arith.constant 0 : index
    %3 = vector.load %arg3[%c0_3, %c0_4] : memref<1x144xf32, #tpu.memory_space<vmem>>, vector<1x144xf32>
    %4 = vector.broadcast %3 : vector<1x144xf32> to vector<72x144xf32>
    %5 = arith.addf %2, %4 : vector<72x144xf32>
    %cst_5 = arith.constant 0.000000e+00 : f32
    %6 = vector.broadcast %cst_5 : f32 to vector<72x144xf32>
    %7 = arith.maximumf %5, %6 : vector<72x144xf32>
    %8 = vector.extract_strided_slice %7 {offsets = [0, 0], sizes = [56, 144], strides = [1, 1]} : vector<72x144xf32> to vector<56x144xf32>
    %9 = arith.truncf %8 : vector<56x144xf32> to vector<56x144xbf16>
    %c0_6 = arith.constant 0 : index
    %c0_7 = arith.constant 0 : index
    %c0_8 = arith.constant 0 : index
    %10 = vector.load %arg4[%c0_6, %c0_7, %c0_8] : memref<3x144x112xbf16, #tpu.memory_space<vmem>>, vector<1x144x112xbf16>
    %11 = vector.shape_cast %10 : vector<1x144x112xbf16> to vector<144x112xbf16>
    %cst_9 = arith.constant dense<0.000000e+00> : vector<56x112xf32>
    %12 = tpu.matmul %9, %11, %cst_9 {dimension_numbers = #tpu.dot_dimension_numbers<[1], [0], [0], [1], [0, 0, 1, 1], [], []>} : vector<56x144xbf16>, vector<144x112xbf16>, vector<56x112xf32> -> vector<56x112xf32>
    %13 = vector.extract_strided_slice %7 {offsets = [8, 0], sizes = [56, 144], strides = [1, 1]} : vector<72x144xf32> to vector<56x144xf32>
    %14 = arith.truncf %13 : vector<56x144xf32> to vector<56x144xbf16>
    %c1 = arith.constant 1 : index
    %c0_10 = arith.constant 0 : index
    %c0_11 = arith.constant 0 : index
    %15 = vector.load %arg4[%c1, %c0_10, %c0_11] : memref<3x144x112xbf16, #tpu.memory_space<vmem>>, vector<1x144x112xbf16>
    %16 = vector.shape_cast %15 : vector<1x144x112xbf16> to vector<144x112xbf16>
    %cst_12 = arith.constant dense<0.000000e+00> : vector<56x112xf32>
    %17 = tpu.matmul %14, %16, %cst_12 {dimension_numbers = #tpu.dot_dimension_numbers<[1], [0], [0], [1], [0, 0, 1, 1], [], []>} : vector<56x144xbf16>, vector<144x112xbf16>, vector<56x112xf32> -> vector<56x112xf32>
    %18 = arith.addf %12, %17 : vector<56x112xf32>
    %19 = vector.extract_strided_slice %7 {offsets = [16, 0], sizes = [56, 144], strides = [1, 1]} : vector<72x144xf32> to vector<56x144xf32>
    %20 = arith.truncf %19 : vector<56x144xf32> to vector<56x144xbf16>
    %c2 = arith.constant 2 : index
    %c0_13 = arith.constant 0 : index
    %c0_14 = arith.constant 0 : index
    %21 = vector.load %arg4[%c2, %c0_13, %c0_14] : memref<3x144x112xbf16, #tpu.memory_space<vmem>>, vector<1x144x112xbf16>
    %22 = vector.shape_cast %21 : vector<1x144x112xbf16> to vector<144x112xbf16>
    %cst_15 = arith.constant dense<0.000000e+00> : vector<56x112xf32>
    %23 = tpu.matmul %20, %22, %cst_15 {dimension_numbers = #tpu.dot_dimension_numbers<[1], [0], [0], [1], [0, 0, 1, 1], [], []>} : vector<56x144xbf16>, vector<144x112xbf16>, vector<56x112xf32> -> vector<56x112xf32>
    %24 = arith.addf %18, %23 : vector<56x112xf32>
    %c0_16 = arith.constant 0 : index
    %c0_17 = arith.constant 0 : index
    %25 = vector.load %arg5[%c0_16, %c0_17] : memref<1x112xf32, #tpu.memory_space<vmem>>, vector<1x112xf32>
    %26 = vector.broadcast %25 : vector<1x112xf32> to vector<56x112xf32>
    %27 = arith.addf %24, %26 : vector<56x112xf32>
    %cst_18 = arith.constant 0.000000e+00 : f32
    %28 = vector.broadcast %cst_18 : f32 to vector<56x112xf32>
    %29 = arith.maximumf %27, %28 : vector<56x112xf32>
    %30 = vector.extract_strided_slice %29 {offsets = [0, 0], sizes = [8, 112], strides = [1, 1]} : vector<56x112xf32> to vector<8x112xf32>
    %31 = arith.truncf %30 : vector<8x112xf32> to vector<8x112xbf16>
    %c0_19 = arith.constant 0 : index
    %c0_20 = arith.constant 0 : index
    %c0_21 = arith.constant 0 : index
    %32 = vector.load %arg6[%c0_19, %c0_20, %c0_21] : memref<7x112x128xbf16, #tpu.memory_space<vmem>>, vector<1x112x128xbf16>
    %33 = vector.shape_cast %32 : vector<1x112x128xbf16> to vector<112x128xbf16>
    %cst_22 = arith.constant dense<0.000000e+00> : vector<8x128xf32>
    %34 = tpu.matmul %31, %33, %cst_22 {dimension_numbers = #tpu.dot_dimension_numbers<[1], [0], [0], [1], [0, 0, 1, 1], [], []>} : vector<8x112xbf16>, vector<112x128xbf16>, vector<8x128xf32> -> vector<8x128xf32>
    %35 = vector.extract_strided_slice %29 {offsets = [8, 0], sizes = [8, 112], strides = [1, 1]} : vector<56x112xf32> to vector<8x112xf32>
    %36 = arith.truncf %35 : vector<8x112xf32> to vector<8x112xbf16>
    %c1_23 = arith.constant 1 : index
    %c0_24 = arith.constant 0 : index
    %c0_25 = arith.constant 0 : index
    %37 = vector.load %arg6[%c1_23, %c0_24, %c0_25] : memref<7x112x128xbf16, #tpu.memory_space<vmem>>, vector<1x112x128xbf16>
    %38 = vector.shape_cast %37 : vector<1x112x128xbf16> to vector<112x128xbf16>
    %cst_26 = arith.constant dense<0.000000e+00> : vector<8x128xf32>
    %39 = tpu.matmul %36, %38, %cst_26 {dimension_numbers = #tpu.dot_dimension_numbers<[1], [0], [0], [1], [0, 0, 1, 1], [], []>} : vector<8x112xbf16>, vector<112x128xbf16>, vector<8x128xf32> -> vector<8x128xf32>
    %40 = arith.addf %34, %39 : vector<8x128xf32>
    %41 = vector.extract_strided_slice %29 {offsets = [16, 0], sizes = [8, 112], strides = [1, 1]} : vector<56x112xf32> to vector<8x112xf32>
    %42 = arith.truncf %41 : vector<8x112xf32> to vector<8x112xbf16>
    %c2_27 = arith.constant 2 : index
    %c0_28 = arith.constant 0 : index
    %c0_29 = arith.constant 0 : index
    %43 = vector.load %arg6[%c2_27, %c0_28, %c0_29] : memref<7x112x128xbf16, #tpu.memory_space<vmem>>, vector<1x112x128xbf16>
    %44 = vector.shape_cast %43 : vector<1x112x128xbf16> to vector<112x128xbf16>
    %cst_30 = arith.constant dense<0.000000e+00> : vector<8x128xf32>
    %45 = tpu.matmul %42, %44, %cst_30 {dimension_numbers = #tpu.dot_dimension_numbers<[1], [0], [0], [1], [0, 0, 1, 1], [], []>} : vector<8x112xbf16>, vector<112x128xbf16>, vector<8x128xf32> -> vector<8x128xf32>
    %46 = arith.addf %40, %45 : vector<8x128xf32>
    %47 = vector.extract_strided_slice %29 {offsets = [24, 0], sizes = [8, 112], strides = [1, 1]} : vector<56x112xf32> to vector<8x112xf32>
    %48 = arith.truncf %47 : vector<8x112xf32> to vector<8x112xbf16>
    %c3 = arith.constant 3 : index
    %c0_31 = arith.constant 0 : index
    %c0_32 = arith.constant 0 : index
    %49 = vector.load %arg6[%c3, %c0_31, %c0_32] : memref<7x112x128xbf16, #tpu.memory_space<vmem>>, vector<1x112x128xbf16>
    %50 = vector.shape_cast %49 : vector<1x112x128xbf16> to vector<112x128xbf16>
    %cst_33 = arith.constant dense<0.000000e+00> : vector<8x128xf32>
    %51 = tpu.matmul %48, %50, %cst_33 {dimension_numbers = #tpu.dot_dimension_numbers<[1], [0], [0], [1], [0, 0, 1, 1], [], []>} : vector<8x112xbf16>, vector<112x128xbf16>, vector<8x128xf32> -> vector<8x128xf32>
    %52 = arith.addf %46, %51 : vector<8x128xf32>
    %53 = vector.extract_strided_slice %29 {offsets = [32, 0], sizes = [8, 112], strides = [1, 1]} : vector<56x112xf32> to vector<8x112xf32>
    %54 = arith.truncf %53 : vector<8x112xf32> to vector<8x112xbf16>
    %c4 = arith.constant 4 : index
    %c0_34 = arith.constant 0 : index
    %c0_35 = arith.constant 0 : index
    %55 = vector.load %arg6[%c4, %c0_34, %c0_35] : memref<7x112x128xbf16, #tpu.memory_space<vmem>>, vector<1x112x128xbf16>
    %56 = vector.shape_cast %55 : vector<1x112x128xbf16> to vector<112x128xbf16>
    %cst_36 = arith.constant dense<0.000000e+00> : vector<8x128xf32>
    %57 = tpu.matmul %54, %56, %cst_36 {dimension_numbers = #tpu.dot_dimension_numbers<[1], [0], [0], [1], [0, 0, 1, 1], [], []>} : vector<8x112xbf16>, vector<112x128xbf16>, vector<8x128xf32> -> vector<8x128xf32>
    %58 = arith.addf %52, %57 : vector<8x128xf32>
    %59 = vector.extract_strided_slice %29 {offsets = [40, 0], sizes = [8, 112], strides = [1, 1]} : vector<56x112xf32> to vector<8x112xf32>
    %60 = arith.truncf %59 : vector<8x112xf32> to vector<8x112xbf16>
    %c5 = arith.constant 5 : index
    %c0_37 = arith.constant 0 : index
    %c0_38 = arith.constant 0 : index
    %61 = vector.load %arg6[%c5, %c0_37, %c0_38] : memref<7x112x128xbf16, #tpu.memory_space<vmem>>, vector<1x112x128xbf16>
    %62 = vector.shape_cast %61 : vector<1x112x128xbf16> to vector<112x128xbf16>
    %cst_39 = arith.constant dense<0.000000e+00> : vector<8x128xf32>
    %63 = tpu.matmul %60, %62, %cst_39 {dimension_numbers = #tpu.dot_dimension_numbers<[1], [0], [0], [1], [0, 0, 1, 1], [], []>} : vector<8x112xbf16>, vector<112x128xbf16>, vector<8x128xf32> -> vector<8x128xf32>
    %64 = arith.addf %58, %63 : vector<8x128xf32>
    %65 = vector.extract_strided_slice %29 {offsets = [48, 0], sizes = [8, 112], strides = [1, 1]} : vector<56x112xf32> to vector<8x112xf32>
    %66 = arith.truncf %65 : vector<8x112xf32> to vector<8x112xbf16>
    %c6 = arith.constant 6 : index
    %c0_40 = arith.constant 0 : index
    %c0_41 = arith.constant 0 : index
    %67 = vector.load %arg6[%c6, %c0_40, %c0_41] : memref<7x112x128xbf16, #tpu.memory_space<vmem>>, vector<1x112x128xbf16>
    %68 = vector.shape_cast %67 : vector<1x112x128xbf16> to vector<112x128xbf16>
    %cst_42 = arith.constant dense<0.000000e+00> : vector<8x128xf32>
    %69 = tpu.matmul %66, %68, %cst_42 {dimension_numbers = #tpu.dot_dimension_numbers<[1], [0], [0], [1], [0, 0, 1, 1], [], []>} : vector<8x112xbf16>, vector<112x128xbf16>, vector<8x128xf32> -> vector<8x128xf32>
    %70 = arith.addf %64, %69 : vector<8x128xf32>
    %c0_43 = arith.constant 0 : index
    %c0_44 = arith.constant 0 : index
    %71 = vector.load %arg7[%c0_43, %c0_44] : memref<1x128xf32, #tpu.memory_space<vmem>>, vector<1x128xf32>
    %72 = vector.broadcast %71 : vector<1x128xf32> to vector<8x128xf32>
    %73 = arith.addf %70, %72 : vector<8x128xf32>
    %c0_45 = arith.constant 0 : index
    %c0_46 = arith.constant 0 : index
    %74 = vector.load %arg8[%c0_45, %c0_46] : memref<8x128xf32, #tpu.memory_space<vmem>>, vector<8x128xf32>
    tpu.vector_store %arg8[%c0_45, %c0_46], %73 {strides = array<i32>} : memref<8x128xf32, #tpu.memory_space<vmem>>, vector<8x128xf32>,
    return
  }
  func.func @transform_0(%arg0: i32) -> (i32, i32) {
    %c0_i32 = arith.constant 0 : i32
    %c0_i32_0 = arith.constant 0 : i32
    return %arg0, %c0_i32 : i32, i32
  }
  func.func @transform_1(%arg0: i32) -> (i32, i32) {
    %c0_i32 = arith.constant 0 : i32
    %c0_i32_0 = arith.constant 0 : i32
    %c0_i32_1 = arith.constant 0 : i32
    return %c0_i32, %c0_i32_0 : i32, i32
  }
  func.func @transform_2(%arg0: i32) -> (i32, i32) {
    %c0_i32 = arith.constant 0 : i32
    %c0_i32_0 = arith.constant 0 : i32
    %c0_i32_1 = arith.constant 0 : i32
    return %c0_i32, %c0_i32_0 : i32, i32
  }
  func.func @transform_3(%arg0: i32) -> (i32, i32, i32) {
    %c0_i32 = arith.constant 0 : i32
    %c0_i32_0 = arith.constant 0 : i32
    %c0_i32_1 = arith.constant 0 : i32
    %c0_i32_2 = arith.constant 0 : i32
    return %c0_i32, %c0_i32_0, %c0_i32_1 : i32, i32, i32
  }
  func.func @transform_4(%arg0: i32) -> (i32, i32) {
    %c0_i32 = arith.constant 0 : i32
    %c0_i32_0 = arith.constant 0 : i32
    %c0_i32_1 = arith.constant 0 : i32
    return %c0_i32, %c0_i32_0 : i32, i32
  }
  func.func @transform_5(%arg0: i32) -> (i32, i32, i32) {
    %c0_i32 = arith.constant 0 : i32
    %c0_i32_0 = arith.constant 0 : i32
    %c0_i32_1 = arith.constant 0 : i32
    %c0_i32_2 = arith.constant 0 : i32
    return %c0_i32, %c0_i32_0, %c0_i32_1 : i32, i32, i32
  }
  func.func @transform_6(%arg0: i32) -> (i32, i32) {
    %c0_i32 = arith.constant 0 : i32
    %c0_i32_0 = arith.constant 0 : i32
    %c0_i32_1 = arith.constant 0 : i32
    return %c0_i32, %c0_i32_0 : i32, i32
  }
  func.func @transform_7(%arg0: i32) -> (i32, i32) {
    %c0_i32 = arith.constant 0 : i32
    %c0_i32_0 = arith.constant 0 : i32
    return %arg0, %c0_i32 : i32, i32
  }
}

</mosaic_0001>

<llo_original>
// kernel: feature_dsr_forward.1
$region0: #{feature_dsr_forward.1}
  #allocation0 [shape = 'u32[]', space=smem, size = 0x4, offset = 0x4, fixed_abs, tag = 'smem constant byte address 0x4 - core index']
  #allocation1 [shape = 'u32[144,128]{1,0:T(1,128)}', space=vmem, size = 0x12000, scoped, tag = 'internal scratch']
  %s0 = inlined_call_operand.vmem [shape: bf16[72,243], index: 0, kind: input, shape index: {}]
  %s1 = inlined_call_operand.vmem [shape: bf16[243,144], index: 1, kind: input, shape index: {}]
  %s2 = inlined_call_operand.vmem [shape: f32[1,144], index: 2, kind: input, shape index: {}]
  %s3 = inlined_call_operand.vmem [shape: bf16[3,144,112], index: 3, kind: input, shape index: {}]
  %s4 = inlined_call_operand.vmem [shape: f32[1,112], index: 4, kind: input, shape index: {}]
  %s5 = inlined_call_operand.vmem [shape: bf16[7,112,128], index: 5, kind: input, shape index: {}]
  %s6 = inlined_call_operand.vmem [shape: f32[1,128], index: 6, kind: input, shape index: {}]
  %s7 = inlined_call_operand.vmem [shape: f32[8,128], index: 7, kind: output, shape index: {}]
  %s8 = sld [smem:[#allocation0]]
  $region38: #{feature_dsr_forward.1} parent=0
    _
  %s10 = ssub.s32 1, %s8
  %s11 = scalar_select 0, %s10, %s8
  // Predicated region
  $region2: #{feature_dsr_forward.1} parent=0 // pred_check
    _
  $region3: #{feature_dsr_forward.1} parent=0 // pred_check_branch
    %13 = sbr.rel (0) target = $region5
  $region4: #{feature_dsr_forward.1} parent=0 // pred_region
    _
  $region5: #{feature_dsr_forward.1} parent=0 // pred_fallthru
    _
  // Predicated region
  $region6: #{feature_dsr_forward.1} parent=0 // pred_check
    _
  $region7: #{feature_dsr_forward.1} parent=0 // pred_check_branch
    %15 = sbr.rel (0) target = $region9
  $region8: #{feature_dsr_forward.1} parent=0 // pred_region
    _
  $region9: #{feature_dsr_forward.1} parent=0 // pred_fallthru
    _
  // Predicated region
  $region10: #{feature_dsr_forward.1} parent=0 // pred_check
    _
  $region11: #{feature_dsr_forward.1} parent=0 // pred_check_branch
    %17 = sbr.rel (0) target = $region13
  $region12: #{feature_dsr_forward.1} parent=0 // pred_region
    _
  $region13: #{feature_dsr_forward.1} parent=0 // pred_fallthru
    _
  // Predicated region
  $region14: #{feature_dsr_forward.1} parent=0 // pred_check
    _
  $region15: #{feature_dsr_forward.1} parent=0 // pred_check_branch
    %19 = sbr.rel (0) target = $region17
  $region16: #{feature_dsr_forward.1} parent=0 // pred_region
    _
  $region17: #{feature_dsr_forward.1} parent=0 // pred_fallthru
    _
  // Predicated region
  $region18: #{feature_dsr_forward.1} parent=0 // pred_check
    _
  $region19: #{feature_dsr_forward.1} parent=0 // pred_check_branch
    %21 = sbr.rel (0) target = $region21
  $region20: #{feature_dsr_forward.1} parent=0 // pred_region
    _
  $region21: #{feature_dsr_forward.1} parent=0 // pred_fallthru
    _
  // Predicated region
  $region22: #{feature_dsr_forward.1} parent=0 // pred_check
    _
  $region23: #{feature_dsr_forward.1} parent=0 // pred_check_branch
    %23 = sbr.rel (0) target = $region25
  $region24: #{feature_dsr_forward.1} parent=0 // pred_region
    _
  $region25: #{feature_dsr_forward.1} parent=0 // pred_fallthru
    _
  // Predicated region
  $region26: #{feature_dsr_forward.1} parent=0 // pred_check
    _
  $region27: #{feature_dsr_forward.1} parent=0 // pred_check_branch
    %25 = sbr.rel (0) target = $region29
  $region28: #{feature_dsr_forward.1} parent=0 // pred_region
    _
  $region29: #{feature_dsr_forward.1} parent=0 // pred_fallthru
    _
  %v27 = vld [vmem:[%s0] sm:$0xff]
  %v28 = vld [vmem:[%s0 + $0x8] sm:$0xff]
  %v29 = vld [vmem:[%s0 + $0x10] sm:$0xff]
  %v30 = vld [vmem:[%s0 + $0x18] sm:$0xff]
  %v31 = vld [vmem:[%s0 + $0x20] sm:$0xff]
  %v32 = vld [vmem:[%s0 + $0x28] sm:$0xff]
  %v33 = vld [vmem:[%s0 + $0x30] sm:$0xff]
  %v34 = vld [vmem:[%s0 + $0x38] sm:$0xff]
  %v35 = vld [vmem:[%s0 + $0x40] sm:$0xff]
  %v36 = vld [vmem:[%s1] sm:$0xff]
  %v37 = vld [vmem:[%s1 + $0x8] sm:$0xff]
  %v38 = vld [vmem:[%s1 + $0x10] sm:$0xff]
  %v39 = vld [vmem:[%s1 + $0x18] sm:$0xff]
  %v40 = vld [vmem:[%s1 + $0x20] sm:$0xff]
  %v41 = vld [vmem:[%s1 + $0x28] sm:$0xff]
  %v42 = vld [vmem:[%s1 + $0x30] sm:$0xff]
  %v43 = vld [vmem:[%s1 + $0x38] sm:$0xff]
  %v44 = vld [vmem:[%s1 + $0x40] sm:$0xff]
  %v45 = vld [vmem:[%s1 + $0x48] sm:$0xff]
  %v46 = vld [vmem:[%s1 + $0x50] sm:$0xff]
  %v47 = vld [vmem:[%s1 + $0x58] sm:$0xff]
  %v48 = vld [vmem:[%s1 + $0x60] sm:$0xff]
  %v49 = vld [vmem:[%s1 + $0x68] sm:$0xff]
  %v50 = vld [vmem:[%s1 + $0x70] sm:$0xff]
  %v51 = vld [vmem:[%s1 + $0x78] sm:$0xff]
  %v52 = vld [vmem:[%s1 + $0x80] sm:$0xff]
  %v53 = vld [vmem:[%s1 + $0x88] sm:$0xff]
  %v54 = vld [vmem:[%s1 + $0x90] sm:$0xff]
  %v55 = vld [vmem:[%s1 + $0x98] sm:$0xff]
  %v56 = vld [vmem:[%s1 + $0xa0] sm:$0xff]
  %v57 = vld [vmem:[%s1 + $0xa8] sm:$0xff]
  %v58 = vld [vmem:[%s1 + $0xb0] sm:$0xff]
  %v59 = vld [vmem:[%s1 + $0xb8] sm:$0xff]
  %v60 = vld [vmem:[%s1 + $0xc0] sm:$0xff]
  %v61 = vld [vmem:[%s1 + $0xc8] sm:$0xff]
  %v62 = vld [vmem:[%s1 + $0xd0] sm:$0xff]
  %v63 = vld [vmem:[%s1 + $0xd8] sm:$0xff]
  %v64 = vld [vmem:[%s1 + $0xe0] sm:$0xff]
  %v65 = vld [vmem:[%s1 + $0xe8] sm:$0xff]
  %v66 = vld [vmem:[%s1 + $0xf0] sm:$0x33]
  %v67 = vld [vmem:[%s2] sm:$0x3]
  %v69 = vlaneseq
  %v70 = vshrl.u32 %v69, 7
  %v71 = vsub.s32 0, %v70
  %v72 = vrot.slane %v67, %v71
  %v73 = vlaneseq
  %v74 = vshrl.u32 %v73, 7
  %v75 = vsub.s32 1, %v74
  %v76 = vrot.slane %v67, %v75
  %v88 = vunpack.c.l.b16 %v27
  %v89 = vunpack.c.h.b16 %v27
  %v90 = vunpack.c.l.b16 %v28
  %v91 = vunpack.c.h.b16 %v28
  %v92 = vunpack.c.l.b16 %v29
  %v93 = vunpack.c.h.b16 %v29
  %v94 = vunpack.c.l.b16 %v30
  %v95 = vunpack.c.h.b16 %v30
  %v96 = vunpack.c.l.b16 %v31
  %v97 = vunpack.c.h.b16 %v31
  %v98 = vunpack.c.l.b16 %v32
  %v99 = vunpack.c.h.b16 %v32
  %v100 = vunpack.c.l.b16 %v33
  %v101 = vunpack.c.h.b16 %v33
  %v102 = vunpack.c.l.b16 %v34
  %v103 = vunpack.c.h.b16 %v34
  %v104 = vunpack.c.l.b16 %v35
  %v105 = vunpack.c.h.b16 %v35
  %v106 = vpack.c.b16 %v90, %v88
  %v107 = vpack.c.b16 %v91, %v89
  %v108 = vpack.c.b16 %v94, %v92
  %v109 = vpack.c.b16 %v95, %v93
  %v110 = vpack.c.b16 %v98, %v96
  %v111 = vpack.c.b16 %v99, %v97
  %v112 = vpack.c.b16 %v102, %v100
  %v113 = vpack.c.b16 %v103, %v101
  %v114 = vpack.c.b16 %v104, %v104
  %v115 = vpack.c.b16 %v105, %v105
  %v152 = vunpack.c.l.b16 %v36
  %v153 = vunpack.c.h.b16 %v36
  %v154 = vunpack.c.l.b16 %v37
  %v155 = vunpack.c.h.b16 %v37
  %v156 = vunpack.c.l.b16 %v38
  %v157 = vunpack.c.h.b16 %v38
  %v158 = vunpack.c.l.b16 %v39
  %v159 = vunpack.c.h.b16 %v39
  %v160 = vunpack.c.l.b16 %v40
  %v161 = vunpack.c.h.b16 %v40
  %v162 = vunpack.c.l.b16 %v41
  %v163 = vunpack.c.h.b16 %v41
  %v164 = vunpack.c.l.b16 %v42
  %v165 = vunpack.c.h.b16 %v42
  %v166 = vunpack.c.l.b16 %v43
  %v167 = vunpack.c.h.b16 %v43
  %v168 = vunpack.c.l.b16 %v44
  %v169 = vunpack.c.h.b16 %v44
  %v170 = vunpack.c.l.b16 %v45
  %v171 = vunpack.c.h.b16 %v45
  %v172 = vunpack.c.l.b16 %v46
  %v173 = vunpack.c.h.b16 %v46
  %v174 = vunpack.c.l.b16 %v47
  %v175 = vunpack.c.h.b16 %v47
  %v176 = vunpack.c.l.b16 %v48
  %v177 = vunpack.c.h.b16 %v48
  %v178 = vunpack.c.l.b16 %v49
  %v179 = vunpack.c.h.b16 %v49
  %v180 = vunpack.c.l.b16 %v50
  %v181 = vunpack.c.h.b16 %v50
  %v182 = vunpack.c.l.b16 %v51
  %v183 = vunpack.c.h.b16 %v51
  %v184 = vunpack.c.l.b16 %v52
  %v185 = vunpack.c.h.b16 %v52
  %v186 = vunpack.c.l.b16 %v53
  %v187 = vunpack.c.h.b16 %v53
  %v188 = vunpack.c.l.b16 %v54
  %v189 = vunpack.c.h.b16 %v54
  %v190 = vunpack.c.l.b16 %v55
  %v191 = vunpack.c.h.b16 %v55
  %v192 = vunpack.c.l.b16 %v56
  %v193 = vunpack.c.h.b16 %v56
  %v194 = vunpack.c.l.b16 %v57
  %v195 = vunpack.c.h.b16 %v57
  %v196 = vunpack.c.l.b16 %v58
  %v197 = vunpack.c.h.b16 %v58
  %v198 = vunpack.c.l.b16 %v59
  %v199 = vunpack.c.h.b16 %v59
  %v200 = vunpack.c.l.b16 %v60
  %v201 = vunpack.c.h.b16 %v60
  %v202 = vunpack.c.l.b16 %v61
  %v203 = vunpack.c.h.b16 %v61
  %v204 = vunpack.c.l.b16 %v62
  %v205 = vunpack.c.h.b16 %v62
  %v206 = vunpack.c.l.b16 %v63
  %v207 = vunpack.c.h.b16 %v63
  %v208 = vunpack.c.l.b16 %v64
  %v209 = vunpack.c.h.b16 %v64
  %v210 = vunpack.c.l.b16 %v65
  %v211 = vunpack.c.h.b16 %v65
  %v212 = vunpack.c.l.b16 %v66
  %v213 = vunpack.c.h.b16 %v66
  %v214 = vpack.c.b16 %v154, %v152
  %v215 = vpack.c.b16 %v155, %v153
  %v216 = vpack.c.b16 %v158, %v156
  %v217 = vpack.c.b16 %v159, %v157
  %v218 = vpack.c.b16 %v162, %v160
  %v219 = vpack.c.b16 %v163, %v161
  %v220 = vpack.c.b16 %v166, %v164
  %v221 = vpack.c.b16 %v167, %v165
  %v222 = vpack.c.b16 %v170, %v168
  %v223 = vpack.c.b16 %v171, %v169
  %v224 = vpack.c.b16 %v174, %v172
  %v225 = vpack.c.b16 %v175, %v173
  %v226 = vpack.c.b16 %v178, %v176
  %v227 = vpack.c.b16 %v179, %v177
  %v228 = vpack.c.b16 %v182, %v180
  %v229 = vpack.c.b16 %v183, %v181
  %v230 = vpack.c.b16 %v186, %v184
  %v231 = vpack.c.b16 %v187, %v185
  %v232 = vpack.c.b16 %v190, %v188
  %v233 = vpack.c.b16 %v191, %v189
  %v234 = vpack.c.b16 %v194, %v192
  %v235 = vpack.c.b16 %v195, %v193
  %v236 = vpack.c.b16 %v198, %v196
  %v237 = vpack.c.b16 %v199, %v197
  %v238 = vpack.c.b16 %v202, %v200
  %v239 = vpack.c.b16 %v203, %v201
  %v240 = vpack.c.b16 %v206, %v204
  %v241 = vpack.c.b16 %v207, %v205
  %v242 = vpack.c.b16 %v210, %v208
  %v243 = vpack.c.b16 %v211, %v209
  %v244 = vpack.c.b16 %v212, %v212
  %v245 = vpack.c.b16 %v213, %v213
  %vm276 = vcmask 941056
  %v278 = vsel %vm276, %v107, 0
  %v281 = vsel %vm276, %v109, 0
  %v284 = vsel %vm276, %v111, 0
  %v287 = vsel %vm276, %v113, 0
  %v290 = vsel %vm276, %v115, 0
  %vm292 = vcmask 1040384
  %vm293 = vcmask 1041408
  %v294 = vsel %vm292, 4294967295, 65535
  %v295 = vsel %vm293, %v294, 0
  %v297 = vand.u32 %v244, %v295
  %v300 = vand.u32 %v245, %v295
  %302 = vmatprep.subr.bf16.mxu0 %v229
  %303 = vmatpush1.bf16.msra.mxu0 %v228
  %304 = vmatprep.subr.bf16.mxu0 %v227
  %305 = vmatpush1.bf16.msra.mxu0 %v226
  %306 = vmatprep.subr.bf16.mxu0 %v225
  %307 = vmatpush1.bf16.msra.mxu0 %v224
  %308 = vmatprep.subr.bf16.mxu0 %v223
  %309 = vmatpush1.bf16.msra.mxu0 %v222
  %310 = vmatprep.subr.bf16.mxu0 %v221
  %311 = vmatpush1.bf16.msra.mxu0 %v220
  %312 = vmatprep.subr.bf16.mxu0 %v219
  %313 = vmatpush1.bf16.msra.mxu0 %v218
  %314 = vmatprep.subr.bf16.mxu0 %v217
  %315 = vmatpush1.bf16.msra.mxu0 %v216
  %316 = vmatprep.subr.bf16.mxu0 %v215
  %317 = vmatpush1.bf16.msra.mxu0 %v214
  %318 = vmatprep.subr.bf16.mxu0 %v300
  %319 = vmatpush2.bf16.msra.mxu0 %v297
  %320 = vmatprep.subr.bf16.mxu0 %v243
  %321 = vmatpush2.bf16.msra.mxu0 %v242
  %322 = vmatprep.subr.bf16.mxu0 %v241
  %323 = vmatpush2.bf16.msra.mxu0 %v240
  %324 = vmatprep.subr.bf16.mxu0 %v239
  %325 = vmatpush2.bf16.msra.mxu0 %v238
  %326 = vmatprep.subr.bf16.mxu0 %v237
  %327 = vmatpush2.bf16.msra.mxu0 %v236
  %328 = vmatprep.subr.bf16.mxu0 %v235
  %329 = vmatpush2.bf16.msra.mxu0 %v234
  %330 = vmatprep.subr.bf16.mxu0 %v233
  %331 = vmatpush2.bf16.msra.mxu0 %v232
  %332 = vmatprep.subr.bf16.mxu0 %v231
  %333 = vmatpush2.bf16.msra.mxu0 %v230
  %334 = vmatprep.mubr.bf16.mxu0 %v278
  %335 = vmatmul.mubr.bf16.gmra.mxu0 %v106
  %v336 = vpop.f32.mrf.mxu0
  %v337 = vadd.f32 %v72, %v336
  %v338 = vpop.f32.mrf.mxu0
  %v339 = vadd.f32 %v76, %v338
  %v340 = vpop.f32.mrf.mxu0
  %v341 = vadd.f32 %v72, %v340
  %v342 = vpop.f32.mrf.mxu0
  %v343 = vadd.f32 %v76, %v342
  %344 = vmatprep.mubr.bf16.mxu0 %v281
  %345 = vmatmul.mubr.bf16.gmra.mxu0 %v108
  %v346 = vpop.f32.mrf.mxu0
  %v347 = vadd.f32 %v72, %v346
  %v348 = vpop.f32.mrf.mxu0
  %v349 = vadd.f32 %v76, %v348
  %v350 = vpop.f32.mrf.mxu0
  %v351 = vadd.f32 %v72, %v350
  %v352 = vpop.f32.mrf.mxu0
  %v353 = vadd.f32 %v76, %v352
  %354 = vmatprep.mubr.bf16.mxu0 %v284
  %355 = vmatmul.mubr.bf16.gmra.mxu0 %v110
  %v356 = vpop.f32.mrf.mxu0
  %v357 = vadd.f32 %v72, %v356
  %v358 = vpop.f32.mrf.mxu0
  %v359 = vadd.f32 %v76, %v358
  %v360 = vpop.f32.mrf.mxu0
  %v361 = vadd.f32 %v72, %v360
  %v362 = vpop.f32.mrf.mxu0
  %v363 = vadd.f32 %v76, %v362
  %364 = vmatprep.mubr.bf16.mxu0 %v287
  %365 = vmatmul.mubr.bf16.gmra.mxu0 %v112
  %v366 = vpop.f32.mrf.mxu0
  %v367 = vadd.f32 %v72, %v366
  %v368 = vpop.f32.mrf.mxu0
  %v369 = vadd.f32 %v76, %v368
  %v370 = vpop.f32.mrf.mxu0
  %v371 = vadd.f32 %v72, %v370
  %v372 = vpop.f32.mrf.mxu0
  %v373 = vadd.f32 %v76, %v372
  %374 = vmatprep.mubr.bf16.mxu0 %v290
  %375 = vmatmul.mubr.bf16.gmra.mxu0 %v114
  %v376 = vpop.f32.mrf.mxu0
  %v377 = vadd.f32 %v72, %v376
  %v378 = vpop.f32.mrf.mxu0
  %v379 = vadd.f32 %v76, %v378
  %v380 = vpop.f32.mrf.mxu0
  %v381 = vpop.f32.mrf.mxu0
  %382 = vdwg.mxu0
  %v383 = vmax.f32 %v337, 0.0
  %v384 = vmax.f32 %v339, 0.0
  %v385 = vmax.f32 %v341, 0.0
  %v386 = vmax.f32 %v343, 0.0
  %v387 = vmax.f32 %v347, 0.0
  %v388 = vmax.f32 %v349, 0.0
  %v389 = vmax.f32 %v351, 0.0
  %v390 = vmax.f32 %v353, 0.0
  %v391 = vmax.f32 %v357, 0.0
  %v392 = vmax.f32 %v359, 0.0
  %v393 = vmax.f32 %v361, 0.0
  %v394 = vmax.f32 %v363, 0.0
  %v395 = vmax.f32 %v367, 0.0
  %v396 = vmax.f32 %v369, 0.0
  %v397 = vmax.f32 %v371, 0.0
  %v398 = vmax.f32 %v373, 0.0
  %v399 = vmax.f32 %v377, 0.0
  %v400 = vmax.f32 %v379, 0.0
  %v401 = vpack.c.bf16 %v385, %v383
  %v402 = vpack.c.bf16 %v386, %v384
  %v403 = vpack.c.bf16 %v389, %v387
  %v404 = vpack.c.bf16 %v390, %v388
  %v405 = vpack.c.bf16 %v393, %v391
  %v406 = vpack.c.bf16 %v394, %v392
  %v407 = vpack.c.bf16 %v395, %v395
  %v408 = vpack.c.bf16 %v396, %v396
  %v409 = vld [vmem:[%s3] sm:$0xf]
  %v410 = vld [vmem:[%s3 + $0x4] sm:$0xf]
  %v411 = vld [vmem:[%s3 + $0x8] sm:$0xf]
  %v412 = vld [vmem:[%s3 + $0xc] sm:$0xf]
  %v413 = vld [vmem:[%s3 + $0x10] sm:$0xf]
  %v414 = vld [vmem:[%s3 + $0x14] sm:$0xf]
  %v415 = vld [vmem:[%s3 + $0x18] sm:$0xf]
  %v416 = vld [vmem:[%s3 + $0x1c] sm:$0xf]
  %v417 = vld [vmem:[%s3 + $0x20] sm:$0xf]
  %v418 = vld [vmem:[%s3 + $0x24] sm:$0xf]
  %v419 = vld [vmem:[%s3 + $0x28] sm:$0xf]
  %v420 = vld [vmem:[%s3 + $0x2c] sm:$0xf]
  %v421 = vld [vmem:[%s3 + $0x30] sm:$0xf]
  %v422 = vld [vmem:[%s3 + $0x34] sm:$0xf]
  %v423 = vld [vmem:[%s3 + $0x38] sm:$0xf]
  %v424 = vld [vmem:[%s3 + $0x3c] sm:$0xf]
  %v425 = vld [vmem:[%s3 + $0x40] sm:$0xf]
  %v426 = vld [vmem:[%s3 + $0x44] sm:$0xf]
  %v427 = vpack.c.bf16 %v387, %v385
  %v428 = vpack.c.bf16 %v388, %v386
  %v429 = vpack.c.bf16 %v391, %v389
  %v430 = vpack.c.bf16 %v392, %v390
  %v431 = vpack.c.bf16 %v395, %v393
  %v432 = vpack.c.bf16 %v396, %v394
  %v433 = vpack.c.bf16 %v397, %v397
  %v434 = vpack.c.bf16 %v398, %v398
  %s435 = scalar_lea.vmem %s3, 72
  %v436 = vld [vmem:[%s435] sm:$0xf]
  %v437 = vld [vmem:[%s435 + $0x4] sm:$0xf]
  %v438 = vld [vmem:[%s435 + $0x8] sm:$0xf]
  %v439 = vld [vmem:[%s435 + $0xc] sm:$0xf]
  %v440 = vld [vmem:[%s435 + $0x10] sm:$0xf]
  %v441 = vld [vmem:[%s435 + $0x14] sm:$0xf]
  %v442 = vld [vmem:[%s435 + $0x18] sm:$0xf]
  %v443 = vld [vmem:[%s435 + $0x1c] sm:$0xf]
  %v444 = vld [vmem:[%s435 + $0x20] sm:$0xf]
  %v445 = vld [vmem:[%s435 + $0x24] sm:$0xf]
  %v446 = vld [vmem:[%s435 + $0x28] sm:$0xf]
  %v447 = vld [vmem:[%s435 + $0x2c] sm:$0xf]
  %v448 = vld [vmem:[%s435 + $0x30] sm:$0xf]
  %v449 = vld [vmem:[%s435 + $0x34] sm:$0xf]
  %v450 = vld [vmem:[%s435 + $0x38] sm:$0xf]
  %v451 = vld [vmem:[%s435 + $0x3c] sm:$0xf]
  %v452 = vld [vmem:[%s435 + $0x40] sm:$0xf]
  %v453 = vld [vmem:[%s435 + $0x44] sm:$0xf]
  %v472 = vunpack.c.l.b16 %v436
  %v473 = vunpack.c.l.b16 %v437
  %v474 = vunpack.c.l.b16 %v438
  %v475 = vunpack.c.l.b16 %v439
  %v476 = vunpack.c.l.b16 %v440
  %v477 = vunpack.c.l.b16 %v441
  %v478 = vunpack.c.l.b16 %v442
  %v479 = vunpack.c.l.b16 %v443
  %v480 = vunpack.c.l.b16 %v444
  %v481 = vunpack.c.l.b16 %v445
  %v482 = vunpack.c.l.b16 %v446
  %v483 = vunpack.c.l.b16 %v447
  %v484 = vunpack.c.l.b16 %v448
  %v485 = vunpack.c.l.b16 %v449
  %v486 = vunpack.c.l.b16 %v450
  %v487 = vunpack.c.l.b16 %v451
  %v488 = vunpack.c.l.b16 %v452
  %v489 = vunpack.c.l.b16 %v453
  %v490 = vpack.c.b16 %v473, %v472
  %v491 = vpack.c.b16 %v475, %v474
  %v492 = vpack.c.b16 %v477, %v476
  %v493 = vpack.c.b16 %v479, %v478
  %v494 = vpack.c.b16 %v481, %v480
  %v495 = vpack.c.b16 %v483, %v482
  %v496 = vpack.c.b16 %v485, %v484
  %v497 = vpack.c.b16 %v487, %v486
  %v498 = vpack.c.b16 %v489, %v488
  %vm508 = vcmask 130048
  %v510 = vsel %vm508, %v428, 0
  %v513 = vsel %vm508, %v430, 0
  %v516 = vsel %vm508, %v432, 0
  %v519 = vsel %vm508, %v434, 0
  %521 = vmatprep.subr.bf16.mxu0 0
  %522 = vmatpush1.bf16.msra.mxu0 %v497
  %523 = vmatprep.subr.bf16.mxu0 0
  %524 = vmatpush1.bf16.msra.mxu0 %v496
  %525 = vmatprep.subr.bf16.mxu0 0
  %526 = vmatpush1.bf16.msra.mxu0 %v495
  %527 = vmatprep.subr.bf16.mxu0 0
  %528 = vmatpush1.bf16.msra.mxu0 %v494
  %529 = vmatprep.subr.bf16.mxu0 0
  %530 = vmatpush1.bf16.msra.mxu0 %v493
  %531 = vmatprep.subr.bf16.mxu0 0
  %532 = vmatpush1.bf16.msra.mxu0 %v492
  %533 = vmatprep.subr.bf16.mxu0 0
  %534 = vmatpush1.bf16.msra.mxu0 %v491
  %535 = vmatprep.subr.bf16.mxu0 0
  %536 = vmatpush1.bf16.msra.mxu0 %v490
  %537 = vmatprep.subr.bf16.mxu0 0
  %538 = vmatpush2.bf16.msra.mxu0 0
  %539 = vmatprep.subr.bf16.mxu0 0
  %540 = vmatpush2.bf16.msra.mxu0 0
  %541 = vmatprep.subr.bf16.mxu0 0
  %542 = vmatpush2.bf16.msra.mxu0 0
  %543 = vmatprep.subr.bf16.mxu0 0
  %544 = vmatpush2.bf16.msra.mxu0 0
  %545 = vmatprep.subr.bf16.mxu0 0
  %546 = vmatpush2.bf16.msra.mxu0 0
  %547 = vmatprep.subr.bf16.mxu0 0
  %548 = vmatpush2.bf16.msra.mxu0 0
  %549 = vmatprep.subr.bf16.mxu0 0
  %550 = vmatpush2.bf16.msra.mxu0 0
  %551 = vmatprep.subr.bf16.mxu0 0
  %552 = vmatpush2.bf16.msra.mxu0 %v498
  %553 = vmatprep.mubr.bf16.mxu0 %v510
  %554 = vmatmul.mubr.bf16.gmra.mxu0 %v427
  %v555 = vpop.f32.mrf.mxu0
  %v556 = vadd.f32 0.0, %v555
  %v557 = vpop.f32.mrf.mxu0
  %v558 = vpop.f32.mrf.mxu0
  %v559 = vadd.f32 0.0, %v558
  %v560 = vpop.f32.mrf.mxu0
  %561 = vmatprep.mubr.bf16.mxu0 %v513
  %562 = vmatmul.mubr.bf16.gmra.mxu0 %v429
  %v563 = vpop.f32.mrf.mxu0
  %v564 = vadd.f32 0.0, %v563
  %v565 = vpop.f32.mrf.mxu0
  %v566 = vpop.f32.mrf.mxu0
  %v567 = vadd.f32 0.0, %v566
  %v568 = vpop.f32.mrf.mxu0
  %569 = vmatprep.mubr.bf16.mxu0 %v516
  %570 = vmatmul.mubr.bf16.gmra.mxu0 %v431
  %v571 = vpop.f32.mrf.mxu0
  %v572 = vadd.f32 0.0, %v571
  %v573 = vpop.f32.mrf.mxu0
  %v574 = vpop.f32.mrf.mxu0
  %v575 = vadd.f32 0.0, %v574
  %v576 = vpop.f32.mrf.mxu0
  %577 = vmatprep.mubr.bf16.mxu0 %v519
  %578 = vmatmul.mubr.bf16.gmra.mxu0 %v433
  %v579 = vpop.f32.mrf.mxu0
  %v580 = vadd.f32 0.0, %v579
  %v581 = vpop.f32.mrf.mxu0
  %v582 = vpop.f32.mrf.mxu0
  %v583 = vpop.f32.mrf.mxu0
  %584 = vdwg.mxu0
  %v603 = vunpack.c.l.b16 %v409
  %v604 = vunpack.c.l.b16 %v410
  %v605 = vunpack.c.l.b16 %v411
  %v606 = vunpack.c.l.b16 %v412
  %v607 = vunpack.c.l.b16 %v413
  %v608 = vunpack.c.l.b16 %v414
  %v609 = vunpack.c.l.b16 %v415
  %v610 = vunpack.c.l.b16 %v416
  %v611 = vunpack.c.l.b16 %v417
  %v612 = vunpack.c.l.b16 %v418
  %v613 = vunpack.c.l.b16 %v419
  %v614 = vunpack.c.l.b16 %v420
  %v615 = vunpack.c.l.b16 %v421
  %v616 = vunpack.c.l.b16 %v422
  %v617 = vunpack.c.l.b16 %v423
  %v618 = vunpack.c.l.b16 %v424
  %v619 = vunpack.c.l.b16 %v425
  %v620 = vunpack.c.l.b16 %v426
  %v621 = vpack.c.b16 %v604, %v603
  %v622 = vpack.c.b16 %v606, %v605
  %v623 = vpack.c.b16 %v608, %v607
  %v624 = vpack.c.b16 %v610, %v609
  %v625 = vpack.c.b16 %v612, %v611
  %v626 = vpack.c.b16 %v614, %v613
  %v627 = vpack.c.b16 %v616, %v615
  %v628 = vpack.c.b16 %v618, %v617
  %v629 = vpack.c.b16 %v620, %v619
  %v640 = vsel %vm508, %v402, 0
  %v643 = vsel %vm508, %v404, 0
  %v646 = vsel %vm508, %v406, 0
  %v649 = vsel %vm508, %v408, 0
  %651 = vmatprep.subr.bf16.mxu0 0
  %652 = vmatpush1.bf16.msra.mxu0 %v628
  %653 = vmatprep.subr.bf16.mxu0 0
  %654 = vmatpush1.bf16.msra.mxu0 %v627
  %655 = vmatprep.subr.bf16.mxu0 0
  %656 = vmatpush1.bf16.msra.mxu0 %v626
  %657 = vmatprep.subr.bf16.mxu0 0
  %658 = vmatpush1.bf16.msra.mxu0 %v625
  %659 = vmatprep.subr.bf16.mxu0 0
  %660 = vmatpush1.bf16.msra.mxu0 %v624
  %661 = vmatprep.subr.bf16.mxu0 0
  %662 = vmatpush1.bf16.msra.mxu0 %v623
  %663 = vmatprep.subr.bf16.mxu0 0
  %664 = vmatpush1.bf16.msra.mxu0 %v622
  %665 = vmatprep.subr.bf16.mxu0 0
  %666 = vmatpush1.bf16.msra.mxu0 %v621
  %667 = vmatprep.subr.bf16.mxu0 0
  %668 = vmatpush2.bf16.msra.mxu0 0
  %669 = vmatprep.subr.bf16.mxu0 0
  %670 = vmatpush2.bf16.msra.mxu0 0
  %671 = vmatprep.subr.bf16.mxu0 0
  %672 = vmatpush2.bf16.msra.mxu0 0
  %673 = vmatprep.subr.bf16.mxu0 0
  %674 = vmatpush2.bf16.msra.mxu0 0
  %675 = vmatprep.subr.bf16.mxu0 0
  %676 = vmatpush2.bf16.msra.mxu0 0
  %677 = vmatprep.subr.bf16.mxu0 0
  %678 = vmatpush2.bf16.msra.mxu0 0
  %679 = vmatprep.subr.bf16.mxu0 0
  %680 = vmatpush2.bf16.msra.mxu0 0
  %681 = vmatprep.subr.bf16.mxu0 0
  %682 = vmatpush2.bf16.msra.mxu0 %v629
  %683 = vmatprep.mubr.bf16.mxu0 %v640
  %684 = vmatmul.mubr.bf16.gmra.mxu0 %v401
  %v685 = vpop.f32.mrf.mxu0
  %v686 = vadd.f32 %v556, %v685
  %v687 = vpop.f32.mrf.mxu0
  %v688 = vpop.f32.mrf.mxu0
  %v689 = vadd.f32 %v559, %v688
  %v690 = vpop.f32.mrf.mxu0
  %691 = vmatprep.mubr.bf16.mxu0 %v643
  %692 = vmatmul.mubr.bf16.gmra.mxu0 %v403
  %v693 = vpop.f32.mrf.mxu0
  %v694 = vadd.f32 %v564, %v693
  %v695 = vpop.f32.mrf.mxu0
  %v696 = vpop.f32.mrf.mxu0
  %v697 = vadd.f32 %v567, %v696
  %v698 = vpop.f32.mrf.mxu0
  %699 = vmatprep.mubr.bf16.mxu0 %v646
  %700 = vmatmul.mubr.bf16.gmra.mxu0 %v405
  %v701 = vpop.f32.mrf.mxu0
  %v702 = vadd.f32 %v572, %v701
  %v703 = vpop.f32.mrf.mxu0
  %v704 = vpop.f32.mrf.mxu0
  %v705 = vadd.f32 %v575, %v704
  %v706 = vpop.f32.mrf.mxu0
  %707 = vmatprep.mubr.bf16.mxu0 %v649
  %708 = vmatmul.mubr.bf16.gmra.mxu0 %v407
  %v709 = vpop.f32.mrf.mxu0
  %v710 = vadd.f32 %v580, %v709
  %v711 = vpop.f32.mrf.mxu0
  %v712 = vpop.f32.mrf.mxu0
  %v713 = vpop.f32.mrf.mxu0
  %714 = vdwg.mxu0
  %v715 = vpack.c.bf16 %v397, %v395
  %v716 = vpack.c.bf16 %v398, %v396
  %v717 = vpack.c.bf16 %v399, %v399
  %v718 = vpack.c.bf16 %v400, %v400
  %s719 = scalar_lea.vmem %s3, 144
  %v720 = vld [vmem:[%s719] sm:$0xf]
  %v721 = vld [vmem:[%s719 + $0x4] sm:$0xf]
  %v722 = vld [vmem:[%s719 + $0x8] sm:$0xf]
  %v723 = vld [vmem:[%s719 + $0xc] sm:$0xf]
  %v724 = vld [vmem:[%s719 + $0x10] sm:$0xf]
  %v725 = vld [vmem:[%s719 + $0x14] sm:$0xf]
  %v726 = vld [vmem:[%s719 + $0x18] sm:$0xf]
  %v727 = vld [vmem:[%s719 + $0x1c] sm:$0xf]
  %v728 = vld [vmem:[%s719 + $0x20] sm:$0xf]
  %v729 = vld [vmem:[%s719 + $0x24] sm:$0xf]
  %v730 = vld [vmem:[%s719 + $0x28] sm:$0xf]
  %v731 = vld [vmem:[%s719 + $0x2c] sm:$0xf]
  %v732 = vld [vmem:[%s719 + $0x30] sm:$0xf]
  %v733 = vld [vmem:[%s719 + $0x34] sm:$0xf]
  %v734 = vld [vmem:[%s719 + $0x38] sm:$0xf]
  %v735 = vld [vmem:[%s719 + $0x3c] sm:$0xf]
  %v736 = vld [vmem:[%s719 + $0x40] sm:$0xf]
  %v737 = vld [vmem:[%s719 + $0x44] sm:$0xf]
  %v756 = vunpack.c.l.b16 %v720
  %v757 = vunpack.c.l.b16 %v721
  %v758 = vunpack.c.l.b16 %v722
  %v759 = vunpack.c.l.b16 %v723
  %v760 = vunpack.c.l.b16 %v724
  %v761 = vunpack.c.l.b16 %v725
  %v762 = vunpack.c.l.b16 %v726
  %v763 = vunpack.c.l.b16 %v727
  %v764 = vunpack.c.l.b16 %v728
  %v765 = vunpack.c.l.b16 %v729
  %v766 = vunpack.c.l.b16 %v730
  %v767 = vunpack.c.l.b16 %v731
  %v768 = vunpack.c.l.b16 %v732
  %v769 = vunpack.c.l.b16 %v733
  %v770 = vunpack.c.l.b16 %v734
  %v771 = vunpack.c.l.b16 %v735
  %v772 = vunpack.c.l.b16 %v736
  %v773 = vunpack.c.l.b16 %v737
  %v774 = vpack.c.b16 %v757, %v756
  %v775 = vpack.c.b16 %v759, %v758
  %v776 = vpack.c.b16 %v761, %v760
  %v777 = vpack.c.b16 %v763, %v762
  %v778 = vpack.c.b16 %v765, %v764
  %v779 = vpack.c.b16 %v767, %v766
  %v780 = vpack.c.b16 %v769, %v768
  %v781 = vpack.c.b16 %v771, %v770
  %v782 = vpack.c.b16 %v773, %v772
  %v793 = vsel %vm508, %v716, 0
  %v796 = vsel %vm508, %v718, 0
  %798 = vmatprep.subr.bf16.mxu0 0
  %799 = vmatpush1.bf16.msra.mxu0 %v781
  %800 = vmatprep.subr.bf16.mxu0 0
  %801 = vmatpush1.bf16.msra.mxu0 %v780
  %802 = vmatprep.subr.bf16.mxu0 0
  %803 = vmatpush1.bf16.msra.mxu0 %v779
  %804 = vmatprep.subr.bf16.mxu0 0
  %805 = vmatpush1.bf16.msra.mxu0 %v778
  %806 = vmatprep.subr.bf16.mxu0 0
  %807 = vmatpush1.bf16.msra.mxu0 %v777
  %808 = vmatprep.subr.bf16.mxu0 0
  %809 = vmatpush1.bf16.msra.mxu0 %v776
  %810 = vmatprep.subr.bf16.mxu0 0
  %811 = vmatpush1.bf16.msra.mxu0 %v775
  %812 = vmatprep.subr.bf16.mxu0 0
  %813 = vmatpush1.bf16.msra.mxu0 %v774
  %814 = vmatprep.subr.bf16.mxu0 0
  %815 = vmatpush2.bf16.msra.mxu0 0
  %816 = vmatprep.subr.bf16.mxu0 0
  %817 = vmatpush2.bf16.msra.mxu0 0
  %818 = vmatprep.subr.bf16.mxu0 0
  %819 = vmatpush2.bf16.msra.mxu0 0
  %820 = vmatprep.subr.bf16.mxu0 0
  %821 = vmatpush2.bf16.msra.mxu0 0
  %822 = vmatprep.subr.bf16.mxu0 0
  %823 = vmatpush2.bf16.msra.mxu0 0
  %824 = vmatprep.subr.bf16.mxu0 0
  %825 = vmatpush2.bf16.msra.mxu0 0
  %826 = vmatprep.subr.bf16.mxu0 0
  %827 = vmatpush2.bf16.msra.mxu0 0
  %828 = vmatprep.subr.bf16.mxu0 0
  %829 = vmatpush2.bf16.msra.mxu0 %v782
  %830 = vmatprep.mubr.bf16.mxu0 %v643
  %831 = vmatmul.mubr.bf16.gmra.mxu0 %v403
  %v832 = vpop.f32.mrf.mxu0
  %v833 = vadd.f32 0.0, %v832
  %v834 = vpop.f32.mrf.mxu0
  %v835 = vpop.f32.mrf.mxu0
  %v836 = vadd.f32 0.0, %v835
  %v837 = vpop.f32.mrf.mxu0
  %838 = vmatprep.mubr.bf16.mxu0 %v646
  %839 = vmatmul.mubr.bf16.gmra.mxu0 %v405
  %v840 = vpop.f32.mrf.mxu0
  %v841 = vadd.f32 0.0, %v840
  %v842 = vpop.f32.mrf.mxu0
  %v843 = vpop.f32.mrf.mxu0
  %v844 = vadd.f32 0.0, %v843
  %v845 = vpop.f32.mrf.mxu0
  %846 = vmatprep.mubr.bf16.mxu0 %v793
  %847 = vmatmul.mubr.bf16.gmra.mxu0 %v715
  %v848 = vpop.f32.mrf.mxu0
  %v849 = vadd.f32 0.0, %v848
  %v850 = vpop.f32.mrf.mxu0
  %v851 = vpop.f32.mrf.mxu0
  %v852 = vadd.f32 0.0, %v851
  %v853 = vpop.f32.mrf.mxu0
  %854 = vmatprep.mubr.bf16.mxu0 %v796
  %855 = vmatmul.mubr.bf16.gmra.mxu0 %v717
  %v856 = vpop.f32.mrf.mxu0
  %v857 = vadd.f32 0.0, %v856
  %v858 = vpop.f32.mrf.mxu0
  %v859 = vpop.f32.mrf.mxu0
  %v860 = vpop.f32.mrf.mxu0
  %861 = vdwg.mxu0
  %v862 = vadd.f32 %v686, %v833
  %v863 = vadd.f32 %v689, %v836
  %v864 = vadd.f32 %v694, %v841
  %v865 = vadd.f32 %v697, %v844
  %v866 = vadd.f32 %v702, %v849
  %v867 = vadd.f32 %v705, %v852
  %v868 = vadd.f32 %v710, %v857
  %v869 = vld [vmem:[%s4] sm:$0x1]
  %v871 = vlaneseq
  %v872 = vshrl.u32 %v871, 7
  %v873 = vsub.s32 0, %v872
  %v874 = vrot.slane %v869, %v873
  %v876 = vadd.f32 %v862, %v874
  %v877 = vadd.f32 %v863, %v874
  %v878 = vadd.f32 %v864, %v874
  %v879 = vadd.f32 %v865, %v874
  %v880 = vadd.f32 %v866, %v874
  %v881 = vadd.f32 %v867, %v874
  %v882 = vadd.f32 %v868, %v874
  %v883 = vmax.f32 %v876, 0.0
  %v884 = vmax.f32 %v877, 0.0
  %v885 = vmax.f32 %v878, 0.0
  %v886 = vmax.f32 %v879, 0.0
  %v887 = vmax.f32 %v880, 0.0
  %v888 = vmax.f32 %v881, 0.0
  %v889 = vmax.f32 %v882, 0.0
  %v890 = vpack.c.bf16 %v883, %v883
  %v891 = vld [vmem:[%s5] sm:$0xf]
  %v892 = vld [vmem:[%s5 + $0x4] sm:$0xf]
  %v893 = vld [vmem:[%s5 + $0x8] sm:$0xf]
  %v894 = vld [vmem:[%s5 + $0xc] sm:$0xf]
  %v895 = vld [vmem:[%s5 + $0x10] sm:$0xf]
  %v896 = vld [vmem:[%s5 + $0x14] sm:$0xf]
  %v897 = vld [vmem:[%s5 + $0x18] sm:$0xf]
  %v898 = vld [vmem:[%s5 + $0x1c] sm:$0xf]
  %v899 = vld [vmem:[%s5 + $0x20] sm:$0xf]
  %v900 = vld [vmem:[%s5 + $0x24] sm:$0xf]
  %v901 = vld [vmem:[%s5 + $0x28] sm:$0xf]
  %v902 = vld [vmem:[%s5 + $0x2c] sm:$0xf]
  %v903 = vld [vmem:[%s5 + $0x30] sm:$0xf]
  %v904 = vld [vmem:[%s5 + $0x34] sm:$0xf]
  %v905 = vpack.c.bf16 %v884, %v884
  %s906 = scalar_lea.vmem %s5, 56
  %v907 = vld [vmem:[%s906] sm:$0xf]
  %v908 = vld [vmem:[%s906 + $0x4] sm:$0xf]
  %v909 = vld [vmem:[%s906 + $0x8] sm:$0xf]
  %v910 = vld [vmem:[%s906 + $0xc] sm:$0xf]
  %v911 = vld [vmem:[%s906 + $0x10] sm:$0xf]
  %v912 = vld [vmem:[%s906 + $0x14] sm:$0xf]
  %v913 = vld [vmem:[%s906 + $0x18] sm:$0xf]
  %v914 = vld [vmem:[%s906 + $0x1c] sm:$0xf]
  %v915 = vld [vmem:[%s906 + $0x20] sm:$0xf]
  %v916 = vld [vmem:[%s906 + $0x24] sm:$0xf]
  %v917 = vld [vmem:[%s906 + $0x28] sm:$0xf]
  %v918 = vld [vmem:[%s906 + $0x2c] sm:$0xf]
  %v919 = vld [vmem:[%s906 + $0x30] sm:$0xf]
  %v920 = vld [vmem:[%s906 + $0x34] sm:$0xf]
  %v935 = vunpack.c.l.b16 %v907
  %v936 = vunpack.c.l.b16 %v908
  %v937 = vunpack.c.l.b16 %v909
  %v938 = vunpack.c.l.b16 %v910
  %v939 = vunpack.c.l.b16 %v911
  %v940 = vunpack.c.l.b16 %v912
  %v941 = vunpack.c.l.b16 %v913
  %v942 = vunpack.c.l.b16 %v914
  %v943 = vunpack.c.l.b16 %v915
  %v944 = vunpack.c.l.b16 %v916
  %v945 = vunpack.c.l.b16 %v917
  %v946 = vunpack.c.l.b16 %v918
  %v947 = vunpack.c.l.b16 %v919
  %v948 = vunpack.c.l.b16 %v920
  %v949 = vpack.c.b16 %v936, %v935
  %v950 = vpack.c.b16 %v938, %v937
  %v951 = vpack.c.b16 %v940, %v939
  %v952 = vpack.c.b16 %v942, %v941
  %v953 = vpack.c.b16 %v944, %v943
  %v954 = vpack.c.b16 %v946, %v945
  %v955 = vpack.c.b16 %v948, %v947
  %vm963 = vcmask 916480
  %v965 = vsel %vm963, %v905, 0
  %967 = vmatprep.subr.bf16.mxu0 0
  %968 = vmatpush1.bf16.msra.mxu0 0
  %969 = vmatprep.subr.bf16.mxu0 0
  %970 = vmatpush1.bf16.msra.mxu0 %v955
  %971 = vmatprep.subr.bf16.mxu0 0
  %972 = vmatpush1.bf16.msra.mxu0 %v954
  %973 = vmatprep.subr.bf16.mxu0 0
  %974 = vmatpush1.bf16.msra.mxu0 %v953
  %975 = vmatprep.subr.bf16.mxu0 0
  %976 = vmatpush1.bf16.msra.mxu0 %v952
  %977 = vmatprep.subr.bf16.mxu0 0
  %978 = vmatpush1.bf16.msra.mxu0 %v951
  %979 = vmatprep.subr.bf16.mxu0 0
  %980 = vmatpush1.bf16.msra.mxu0 %v950
  %981 = vmatprep.subr.bf16.mxu0 0
  %982 = vmatpush1.bf16.msra.mxu0 %v949
  %983 = vmatprep.subr.bf16.mxu0 0
  %984 = vmatpush2.bf16.msra.mxu0 0
  %985 = vmatprep.subr.bf16.mxu0 0
  %986 = vmatpush2.bf16.msra.mxu0 0
  %987 = vmatprep.subr.bf16.mxu0 0
  %988 = vmatpush2.bf16.msra.mxu0 0
  %989 = vmatprep.subr.bf16.mxu0 0
  %990 = vmatpush2.bf16.msra.mxu0 0
  %991 = vmatprep.subr.bf16.mxu0 0
  %992 = vmatpush2.bf16.msra.mxu0 0
  %993 = vmatprep.subr.bf16.mxu0 0
  %994 = vmatpush2.bf16.msra.mxu0 0
  %995 = vmatprep.subr.bf16.mxu0 0
  %996 = vmatpush2.bf16.msra.mxu0 0
  %997 = vmatprep.subr.bf16.mxu0 0
  %998 = vmatpush2.bf16.msra.mxu0 0
  %999 = vmatprep.mubr.bf16.mxu0 0
  %1000 = vmatmul.mubr.bf16.gmra.mxu0 %v965
  %v1001 = vpop.f32.mrf.mxu0
  %v1002 = vadd.f32 0.0, %v1001
  %v1003 = vpop.f32.mrf.mxu0
  %v1004 = vpop.f32.mrf.mxu0
  %v1005 = vpop.f32.mrf.mxu0
  %1006 = vdwg.mxu0
  %v1021 = vunpack.c.l.b16 %v891
  %v1022 = vunpack.c.l.b16 %v892
  %v1023 = vunpack.c.l.b16 %v893
  %v1024 = vunpack.c.l.b16 %v894
  %v1025 = vunpack.c.l.b16 %v895
  %v1026 = vunpack.c.l.b16 %v896
  %v1027 = vunpack.c.l.b16 %v897
  %v1028 = vunpack.c.l.b16 %v898
  %v1029 = vunpack.c.l.b16 %v899
  %v1030 = vunpack.c.l.b16 %v900
  %v1031 = vunpack.c.l.b16 %v901
  %v1032 = vunpack.c.l.b16 %v902
  %v1033 = vunpack.c.l.b16 %v903
  %v1034 = vunpack.c.l.b16 %v904
  %v1035 = vpack.c.b16 %v1022, %v1021
  %v1036 = vpack.c.b16 %v1024, %v1023
  %v1037 = vpack.c.b16 %v1026, %v1025
  %v1038 = vpack.c.b16 %v1028, %v1027
  %v1039 = vpack.c.b16 %v1030, %v1029
  %v1040 = vpack.c.b16 %v1032, %v1031
  %v1041 = vpack.c.b16 %v1034, %v1033
  %v1050 = vsel %vm963, %v890, 0
  %1052 = vmatprep.subr.bf16.mxu0 0
  %1053 = vmatpush1.bf16.msra.mxu0 0
  %1054 = vmatprep.subr.bf16.mxu0 0
  %1055 = vmatpush1.bf16.msra.mxu0 %v1041
  %1056 = vmatprep.subr.bf16.mxu0 0
  %1057 = vmatpush1.bf16.msra.mxu0 %v1040
  %1058 = vmatprep.subr.bf16.mxu0 0
  %1059 = vmatpush1.bf16.msra.mxu0 %v1039
  %1060 = vmatprep.subr.bf16.mxu0 0
  %1061 = vmatpush1.bf16.msra.mxu0 %v1038
  %1062 = vmatprep.subr.bf16.mxu0 0
  %1063 = vmatpush1.bf16.msra.mxu0 %v1037
  %1064 = vmatprep.subr.bf16.mxu0 0
  %1065 = vmatpush1.bf16.msra.mxu0 %v1036
  %1066 = vmatprep.subr.bf16.mxu0 0
  %1067 = vmatpush1.bf16.msra.mxu0 %v1035
  %1068 = vmatprep.subr.bf16.mxu0 0
  %1069 = vmatpush2.bf16.msra.mxu0 0
  %1070 = vmatprep.subr.bf16.mxu0 0
  %1071 = vmatpush2.bf16.msra.mxu0 0
  %1072 = vmatprep.subr.bf16.mxu0 0
  %1073 = vmatpush2.bf16.msra.mxu0 0
  %1074 = vmatprep.subr.bf16.mxu0 0
  %1075 = vmatpush2.bf16.msra.mxu0 0
  %1076 = vmatprep.subr.bf16.mxu0 0
  %1077 = vmatpush2.bf16.msra.mxu0 0
  %1078 = vmatprep.subr.bf16.mxu0 0
  %1079 = vmatpush2.bf16.msra.mxu0 0
  %1080 = vmatprep.subr.bf16.mxu0 0
  %1081 = vmatpush2.bf16.msra.mxu0 0
  %1082 = vmatprep.subr.bf16.mxu0 0
  %1083 = vmatpush2.bf16.msra.mxu0 0
  %1084 = vmatprep.mubr.bf16.mxu0 0
  %1085 = vmatmul.mubr.bf16.gmra.mxu0 %v1050
  %v1086 = vpop.f32.mrf.mxu0
  %v1087 = vadd.f32 %v1002, %v1086
  %v1088 = vpop.f32.mrf.mxu0
  %v1089 = vpop.f32.mrf.mxu0
  %v1090 = vpop.f32.mrf.mxu0
  %1091 = vdwg.mxu0
  %v1092 = vpack.c.bf16 %v885, %v885
  %s1093 = scalar_lea.vmem %s5, 112
  %v1094 = vld [vmem:[%s1093] sm:$0xf]
  %v1095 = vld [vmem:[%s1093 + $0x4] sm:$0xf]
  %v1096 = vld [vmem:[%s1093 + $0x8] sm:$0xf]
  %v1097 = vld [vmem:[%s1093 + $0xc] sm:$0xf]
  %v1098 = vld [vmem:[%s1093 + $0x10] sm:$0xf]
  %v1099 = vld [vmem:[%s1093 + $0x14] sm:$0xf]
  %v1100 = vld [vmem:[%s1093 + $0x18] sm:$0xf]
  %v1101 = vld [vmem:[%s1093 + $0x1c] sm:$0xf]
  %v1102 = vld [vmem:[%s1093 + $0x20] sm:$0xf]
  %v1103 = vld [vmem:[%s1093 + $0x24] sm:$0xf]
  %v1104 = vld [vmem:[%s1093 + $0x28] sm:$0xf]
  %v1105 = vld [vmem:[%s1093 + $0x2c] sm:$0xf]
  %v1106 = vld [vmem:[%s1093 + $0x30] sm:$0xf]
  %v1107 = vld [vmem:[%s1093 + $0x34] sm:$0xf]
  %v1122 = vunpack.c.l.b16 %v1094
  %v1123 = vunpack.c.l.b16 %v1095
  %v1124 = vunpack.c.l.b16 %v1096
  %v1125 = vunpack.c.l.b16 %v1097
  %v1126 = vunpack.c.l.b16 %v1098
  %v1127 = vunpack.c.l.b16 %v1099
  %v1128 = vunpack.c.l.b16 %v1100
  %v1129 = vunpack.c.l.b16 %v1101
  %v1130 = vunpack.c.l.b16 %v1102
  %v1131 = vunpack.c.l.b16 %v1103
  %v1132 = vunpack.c.l.b16 %v1104
  %v1133 = vunpack.c.l.b16 %v1105
  %v1134 = vunpack.c.l.b16 %v1106
  %v1135 = vunpack.c.l.b16 %v1107
  %v1136 = vpack.c.b16 %v1123, %v1122
  %v1137 = vpack.c.b16 %v1125, %v1124
  %v1138 = vpack.c.b16 %v1127, %v1126
  %v1139 = vpack.c.b16 %v1129, %v1128
  %v1140 = vpack.c.b16 %v1131, %v1130
  %v1141 = vpack.c.b16 %v1133, %v1132
  %v1142 = vpack.c.b16 %v1135, %v1134
  %v1151 = vsel %vm963, %v1092, 0
  %1153 = vmatprep.subr.bf16.mxu0 0
  %1154 = vmatpush1.bf16.msra.mxu0 0
  %1155 = vmatprep.subr.bf16.mxu0 0
  %1156 = vmatpush1.bf16.msra.mxu0 %v1142
  %1157 = vmatprep.subr.bf16.mxu0 0
  %1158 = vmatpush1.bf16.msra.mxu0 %v1141
  %1159 = vmatprep.subr.bf16.mxu0 0
  %1160 = vmatpush1.bf16.msra.mxu0 %v1140
  %1161 = vmatprep.subr.bf16.mxu0 0
  %1162 = vmatpush1.bf16.msra.mxu0 %v1139
  %1163 = vmatprep.subr.bf16.mxu0 0
  %1164 = vmatpush1.bf16.msra.mxu0 %v1138
  %1165 = vmatprep.subr.bf16.mxu0 0
  %1166 = vmatpush1.bf16.msra.mxu0 %v1137
  %1167 = vmatprep.subr.bf16.mxu0 0
  %1168 = vmatpush1.bf16.msra.mxu0 %v1136
  %1169 = vmatprep.subr.bf16.mxu0 0
  %1170 = vmatpush2.bf16.msra.mxu0 0
  %1171 = vmatprep.subr.bf16.mxu0 0
  %1172 = vmatpush2.bf16.msra.mxu0 0
  %1173 = vmatprep.subr.bf16.mxu0 0
  %1174 = vmatpush2.bf16.msra.mxu0 0
  %1175 = vmatprep.subr.bf16.mxu0 0
  %1176 = vmatpush2.bf16.msra.mxu0 0
  %1177 = vmatprep.subr.bf16.mxu0 0
  %1178 = vmatpush2.bf16.msra.mxu0 0
  %1179 = vmatprep.subr.bf16.mxu0 0
  %1180 = vmatpush2.bf16.msra.mxu0 0
  %1181 = vmatprep.subr.bf16.mxu0 0
  %1182 = vmatpush2.bf16.msra.mxu0 0
  %1183 = vmatprep.subr.bf16.mxu0 0
  %1184 = vmatpush2.bf16.msra.mxu0 0
  %1185 = vmatprep.mubr.bf16.mxu0 0
  %1186 = vmatmul.mubr.bf16.gmra.mxu0 %v1151
  %v1187 = vpop.f32.mrf.mxu0
  %v1188 = vadd.f32 0.0, %v1187
  %v1189 = vpop.f32.mrf.mxu0
  %v1190 = vpop.f32.mrf.mxu0
  %v1191 = vpop.f32.mrf.mxu0
  %1192 = vdwg.mxu0
  %v1193 = vadd.f32 %v1087, %v1188
  %v1194 = vpack.c.bf16 %v886, %v886
  %s1195 = scalar_lea.vmem %s5, 168
  %v1196 = vld [vmem:[%s1195] sm:$0xf]
  %v1197 = vld [vmem:[%s1195 + $0x4] sm:$0xf]
  %v1198 = vld [vmem:[%s1195 + $0x8] sm:$0xf]
  %v1199 = vld [vmem:[%s1195 + $0xc] sm:$0xf]
  %v1200 = vld [vmem:[%s1195 + $0x10] sm:$0xf]
  %v1201 = vld [vmem:[%s1195 + $0x14] sm:$0xf]
  %v1202 = vld [vmem:[%s1195 + $0x18] sm:$0xf]
  %v1203 = vld [vmem:[%s1195 + $0x1c] sm:$0xf]
  %v1204 = vld [vmem:[%s1195 + $0x20] sm:$0xf]
  %v1205 = vld [vmem:[%s1195 + $0x24] sm:$0xf]
  %v1206 = vld [vmem:[%s1195 + $0x28] sm:$0xf]
  %v1207 = vld [vmem:[%s1195 + $0x2c] sm:$0xf]
  %v1208 = vld [vmem:[%s1195 + $0x30] sm:$0xf]
  %v1209 = vld [vmem:[%s1195 + $0x34] sm:$0xf]
  %v1224 = vunpack.c.l.b16 %v1196
  %v1225 = vunpack.c.l.b16 %v1197
  %v1226 = vunpack.c.l.b16 %v1198
  %v1227 = vunpack.c.l.b16 %v1199
  %v1228 = vunpack.c.l.b16 %v1200
  %v1229 = vunpack.c.l.b16 %v1201
  %v1230 = vunpack.c.l.b16 %v1202
  %v1231 = vunpack.c.l.b16 %v1203
  %v1232 = vunpack.c.l.b16 %v1204
  %v1233 = vunpack.c.l.b16 %v1205
  %v1234 = vunpack.c.l.b16 %v1206
  %v1235 = vunpack.c.l.b16 %v1207
  %v1236 = vunpack.c.l.b16 %v1208
  %v1237 = vunpack.c.l.b16 %v1209
  %v1238 = vpack.c.b16 %v1225, %v1224
  %v1239 = vpack.c.b16 %v1227, %v1226
  %v1240 = vpack.c.b16 %v1229, %v1228
  %v1241 = vpack.c.b16 %v1231, %v1230
  %v1242 = vpack.c.b16 %v1233, %v1232
  %v1243 = vpack.c.b16 %v1235, %v1234
  %v1244 = vpack.c.b16 %v1237, %v1236
  %v1253 = vsel %vm963, %v1194, 0
  %1255 = vmatprep.subr.bf16.mxu0 0
  %1256 = vmatpush1.bf16.msra.mxu0 0
  %1257 = vmatprep.subr.bf16.mxu0 0
  %1258 = vmatpush1.bf16.msra.mxu0 %v1244
  %1259 = vmatprep.subr.bf16.mxu0 0
  %1260 = vmatpush1.bf16.msra.mxu0 %v1243
  %1261 = vmatprep.subr.bf16.mxu0 0
  %1262 = vmatpush1.bf16.msra.mxu0 %v1242
  %1263 = vmatprep.subr.bf16.mxu0 0
  %1264 = vmatpush1.bf16.msra.mxu0 %v1241
  %1265 = vmatprep.subr.bf16.mxu0 0
  %1266 = vmatpush1.bf16.msra.mxu0 %v1240
  %1267 = vmatprep.subr.bf16.mxu0 0
  %1268 = vmatpush1.bf16.msra.mxu0 %v1239
  %1269 = vmatprep.subr.bf16.mxu0 0
  %1270 = vmatpush1.bf16.msra.mxu0 %v1238
  %1271 = vmatprep.subr.bf16.mxu0 0
  %1272 = vmatpush2.bf16.msra.mxu0 0
  %1273 = vmatprep.subr.bf16.mxu0 0
  %1274 = vmatpush2.bf16.msra.mxu0 0
  %1275 = vmatprep.subr.bf16.mxu0 0
  %1276 = vmatpush2.bf16.msra.mxu0 0
  %1277 = vmatprep.subr.bf16.mxu0 0
  %1278 = vmatpush2.bf16.msra.mxu0 0
  %1279 = vmatprep.subr.bf16.mxu0 0
  %1280 = vmatpush2.bf16.msra.mxu0 0
  %1281 = vmatprep.subr.bf16.mxu0 0
  %1282 = vmatpush2.bf16.msra.mxu0 0
  %1283 = vmatprep.subr.bf16.mxu0 0
  %1284 = vmatpush2.bf16.msra.mxu0 0
  %1285 = vmatprep.subr.bf16.mxu0 0
  %1286 = vmatpush2.bf16.msra.mxu0 0
  %1287 = vmatprep.mubr.bf16.mxu0 0
  %1288 = vmatmul.mubr.bf16.gmra.mxu0 %v1253
  %v1289 = vpop.f32.mrf.mxu0
  %v1290 = vadd.f32 0.0, %v1289
  %v1291 = vpop.f32.mrf.mxu0
  %v1292 = vpop.f32.mrf.mxu0
  %v1293 = vpop.f32.mrf.mxu0
  %1294 = vdwg.mxu0
  %v1295 = vadd.f32 %v1193, %v1290
  %v1296 = vpack.c.bf16 %v887, %v887
  %s1297 = scalar_lea.vmem %s5, 224
  %v1298 = vld [vmem:[%s1297] sm:$0xf]
  %v1299 = vld [vmem:[%s1297 + $0x4] sm:$0xf]
  %v1300 = vld [vmem:[%s1297 + $0x8] sm:$0xf]
  %v1301 = vld [vmem:[%s1297 + $0xc] sm:$0xf]
  %v1302 = vld [vmem:[%s1297 + $0x10] sm:$0xf]
  %v1303 = vld [vmem:[%s1297 + $0x14] sm:$0xf]
  %v1304 = vld [vmem:[%s1297 + $0x18] sm:$0xf]
  %v1305 = vld [vmem:[%s1297 + $0x1c] sm:$0xf]
  %v1306 = vld [vmem:[%s1297 + $0x20] sm:$0xf]
  %v1307 = vld [vmem:[%s1297 + $0x24] sm:$0xf]
  %v1308 = vld [vmem:[%s1297 + $0x28] sm:$0xf]
  %v1309 = vld [vmem:[%s1297 + $0x2c] sm:$0xf]
  %v1310 = vld [vmem:[%s1297 + $0x30] sm:$0xf]
  %v1311 = vld [vmem:[%s1297 + $0x34] sm:$0xf]
  %v1326 = vunpack.c.l.b16 %v1298
  %v1327 = vunpack.c.l.b16 %v1299
  %v1328 = vunpack.c.l.b16 %v1300
  %v1329 = vunpack.c.l.b16 %v1301
  %v1330 = vunpack.c.l.b16 %v1302
  %v1331 = vunpack.c.l.b16 %v1303
  %v1332 = vunpack.c.l.b16 %v1304
  %v1333 = vunpack.c.l.b16 %v1305
  %v1334 = vunpack.c.l.b16 %v1306
  %v1335 = vunpack.c.l.b16 %v1307
  %v1336 = vunpack.c.l.b16 %v1308
  %v1337 = vunpack.c.l.b16 %v1309
  %v1338 = vunpack.c.l.b16 %v1310
  %v1339 = vunpack.c.l.b16 %v1311
  %v1340 = vpack.c.b16 %v1327, %v1326
  %v1341 = vpack.c.b16 %v1329, %v1328
  %v1342 = vpack.c.b16 %v1331, %v1330
  %v1343 = vpack.c.b16 %v1333, %v1332
  %v1344 = vpack.c.b16 %v1335, %v1334
  %v1345 = vpack.c.b16 %v1337, %v1336
  %v1346 = vpack.c.b16 %v1339, %v1338
  %v1355 = vsel %vm963, %v1296, 0
  %1357 = vmatprep.subr.bf16.mxu0 0
  %1358 = vmatpush1.bf16.msra.mxu0 0
  %1359 = vmatprep.subr.bf16.mxu0 0
  %1360 = vmatpush1.bf16.msra.mxu0 %v1346
  %1361 = vmatprep.subr.bf16.mxu0 0
  %1362 = vmatpush1.bf16.msra.mxu0 %v1345
  %1363 = vmatprep.subr.bf16.mxu0 0
  %1364 = vmatpush1.bf16.msra.mxu0 %v1344
  %1365 = vmatprep.subr.bf16.mxu0 0
  %1366 = vmatpush1.bf16.msra.mxu0 %v1343
  %1367 = vmatprep.subr.bf16.mxu0 0
  %1368 = vmatpush1.bf16.msra.mxu0 %v1342
  %1369 = vmatprep.subr.bf16.mxu0 0
  %1370 = vmatpush1.bf16.msra.mxu0 %v1341
  %1371 = vmatprep.subr.bf16.mxu0 0
  %1372 = vmatpush1.bf16.msra.mxu0 %v1340
  %1373 = vmatprep.subr.bf16.mxu0 0
  %1374 = vmatpush2.bf16.msra.mxu0 0
  %1375 = vmatprep.subr.bf16.mxu0 0
  %1376 = vmatpush2.bf16.msra.mxu0 0
  %1377 = vmatprep.subr.bf16.mxu0 0
  %1378 = vmatpush2.bf16.msra.mxu0 0
  %1379 = vmatprep.subr.bf16.mxu0 0
  %1380 = vmatpush2.bf16.msra.mxu0 0
  %1381 = vmatprep.subr.bf16.mxu0 0
  %1382 = vmatpush2.bf16.msra.mxu0 0
  %1383 = vmatprep.subr.bf16.mxu0 0
  %1384 = vmatpush2.bf16.msra.mxu0 0
  %1385 = vmatprep.subr.bf16.mxu0 0
  %1386 = vmatpush2.bf16.msra.mxu0 0
  %1387 = vmatprep.subr.bf16.mxu0 0
  %1388 = vmatpush2.bf16.msra.mxu0 0
  %1389 = vmatprep.mubr.bf16.mxu0 0
  %1390 = vmatmul.mubr.bf16.gmra.mxu0 %v1355
  %v1391 = vpop.f32.mrf.mxu0
  %v1392 = vadd.f32 0.0, %v1391
  %v1393 = vpop.f32.mrf.mxu0
  %v1394 = vpop.f32.mrf.mxu0
  %v1395 = vpop.f32.mrf.mxu0
  %1396 = vdwg.mxu0
  %v1397 = vadd.f32 %v1295, %v1392
  %v1398 = vpack.c.bf16 %v888, %v888
  %s1399 = scalar_lea.vmem %s5, 280
  %v1400 = vld [vmem:[%s1399] sm:$0xf]
  %v1401 = vld [vmem:[%s1399 + $0x4] sm:$0xf]
  %v1402 = vld [vmem:[%s1399 + $0x8] sm:$0xf]
  %v1403 = vld [vmem:[%s1399 + $0xc] sm:$0xf]
  %v1404 = vld [vmem:[%s1399 + $0x10] sm:$0xf]
  %v1405 = vld [vmem:[%s1399 + $0x14] sm:$0xf]
  %v1406 = vld [vmem:[%s1399 + $0x18] sm:$0xf]
  %v1407 = vld [vmem:[%s1399 + $0x1c] sm:$0xf]
  %v1408 = vld [vmem:[%s1399 + $0x20] sm:$0xf]
  %v1409 = vld [vmem:[%s1399 + $0x24] sm:$0xf]
  %v1410 = vld [vmem:[%s1399 + $0x28] sm:$0xf]
  %v1411 = vld [vmem:[%s1399 + $0x2c] sm:$0xf]
  %v1412 = vld [vmem:[%s1399 + $0x30] sm:$0xf]
  %v1413 = vld [vmem:[%s1399 + $0x34] sm:$0xf]
  %v1428 = vunpack.c.l.b16 %v1400
  %v1429 = vunpack.c.l.b16 %v1401
  %v1430 = vunpack.c.l.b16 %v1402
  %v1431 = vunpack.c.l.b16 %v1403
  %v1432 = vunpack.c.l.b16 %v1404
  %v1433 = vunpack.c.l.b16 %v1405
  %v1434 = vunpack.c.l.b16 %v1406
  %v1435 = vunpack.c.l.b16 %v1407
  %v1436 = vunpack.c.l.b16 %v1408
  %v1437 = vunpack.c.l.b16 %v1409
  %v1438 = vunpack.c.l.b16 %v1410
  %v1439 = vunpack.c.l.b16 %v1411
  %v1440 = vunpack.c.l.b16 %v1412
  %v1441 = vunpack.c.l.b16 %v1413
  %v1442 = vpack.c.b16 %v1429, %v1428
  %v1443 = vpack.c.b16 %v1431, %v1430
  %v1444 = vpack.c.b16 %v1433, %v1432
  %v1445 = vpack.c.b16 %v1435, %v1434
  %v1446 = vpack.c.b16 %v1437, %v1436
  %v1447 = vpack.c.b16 %v1439, %v1438
  %v1448 = vpack.c.b16 %v1441, %v1440
  %v1457 = vsel %vm963, %v1398, 0
  %1459 = vmatprep.subr.bf16.mxu0 0
  %1460 = vmatpush1.bf16.msra.mxu0 0
  %1461 = vmatprep.subr.bf16.mxu0 0
  %1462 = vmatpush1.bf16.msra.mxu0 %v1448
  %1463 = vmatprep.subr.bf16.mxu0 0
  %1464 = vmatpush1.bf16.msra.mxu0 %v1447
  %1465 = vmatprep.subr.bf16.mxu0 0
  %1466 = vmatpush1.bf16.msra.mxu0 %v1446
  %1467 = vmatprep.subr.bf16.mxu0 0
  %1468 = vmatpush1.bf16.msra.mxu0 %v1445
  %1469 = vmatprep.subr.bf16.mxu0 0
  %1470 = vmatpush1.bf16.msra.mxu0 %v1444
  %1471 = vmatprep.subr.bf16.mxu0 0
  %1472 = vmatpush1.bf16.msra.mxu0 %v1443
  %1473 = vmatprep.subr.bf16.mxu0 0
  %1474 = vmatpush1.bf16.msra.mxu0 %v1442
  %1475 = vmatprep.subr.bf16.mxu0 0
  %1476 = vmatpush2.bf16.msra.mxu0 0
  %1477 = vmatprep.subr.bf16.mxu0 0
  %1478 = vmatpush2.bf16.msra.mxu0 0
  %1479 = vmatprep.subr.bf16.mxu0 0
  %1480 = vmatpush2.bf16.msra.mxu0 0
  %1481 = vmatprep.subr.bf16.mxu0 0
  %1482 = vmatpush2.bf16.msra.mxu0 0
  %1483 = vmatprep.subr.bf16.mxu0 0
  %1484 = vmatpush2.bf16.msra.mxu0 0
  %1485 = vmatprep.subr.bf16.mxu0 0
  %1486 = vmatpush2.bf16.msra.mxu0 0
  %1487 = vmatprep.subr.bf16.mxu0 0
  %1488 = vmatpush2.bf16.msra.mxu0 0
  %1489 = vmatprep.subr.bf16.mxu0 0
  %1490 = vmatpush2.bf16.msra.mxu0 0
  %1491 = vmatprep.mubr.bf16.mxu0 0
  %1492 = vmatmul.mubr.bf16.gmra.mxu0 %v1457
  %v1493 = vpop.f32.mrf.mxu0
  %v1494 = vadd.f32 0.0, %v1493
  %v1495 = vpop.f32.mrf.mxu0
  %v1496 = vpop.f32.mrf.mxu0
  %v1497 = vpop.f32.mrf.mxu0
  %1498 = vdwg.mxu0
  %v1499 = vadd.f32 %v1397, %v1494
  %v1500 = vpack.c.bf16 %v889, %v889
  %s1501 = scalar_lea.vmem %s5, 336
  %v1502 = vld [vmem:[%s1501] sm:$0xf]
  %v1503 = vld [vmem:[%s1501 + $0x4] sm:$0xf]
  %v1504 = vld [vmem:[%s1501 + $0x8] sm:$0xf]
  %v1505 = vld [vmem:[%s1501 + $0xc] sm:$0xf]
  %v1506 = vld [vmem:[%s1501 + $0x10] sm:$0xf]
  %v1507 = vld [vmem:[%s1501 + $0x14] sm:$0xf]
  %v1508 = vld [vmem:[%s1501 + $0x18] sm:$0xf]
  %v1509 = vld [vmem:[%s1501 + $0x1c] sm:$0xf]
  %v1510 = vld [vmem:[%s1501 + $0x20] sm:$0xf]
  %v1511 = vld [vmem:[%s1501 + $0x24] sm:$0xf]
  %v1512 = vld [vmem:[%s1501 + $0x28] sm:$0xf]
  %v1513 = vld [vmem:[%s1501 + $0x2c] sm:$0xf]
  %v1514 = vld [vmem:[%s1501 + $0x30] sm:$0xf]
  %v1515 = vld [vmem:[%s1501 + $0x34] sm:$0xf]
  %v1530 = vunpack.c.l.b16 %v1502
  %v1531 = vunpack.c.l.b16 %v1503
  %v1532 = vunpack.c.l.b16 %v1504
  %v1533 = vunpack.c.l.b16 %v1505
  %v1534 = vunpack.c.l.b16 %v1506
  %v1535 = vunpack.c.l.b16 %v1507
  %v1536 = vunpack.c.l.b16 %v1508
  %v1537 = vunpack.c.l.b16 %v1509
  %v1538 = vunpack.c.l.b16 %v1510
  %v1539 = vunpack.c.l.b16 %v1511
  %v1540 = vunpack.c.l.b16 %v1512
  %v1541 = vunpack.c.l.b16 %v1513
  %v1542 = vunpack.c.l.b16 %v1514
  %v1543 = vunpack.c.l.b16 %v1515
  %v1544 = vpack.c.b16 %v1531, %v1530
  %v1545 = vpack.c.b16 %v1533, %v1532
  %v1546 = vpack.c.b16 %v1535, %v1534
  %v1547 = vpack.c.b16 %v1537, %v1536
  %v1548 = vpack.c.b16 %v1539, %v1538
  %v1549 = vpack.c.b16 %v1541, %v1540
  %v1550 = vpack.c.b16 %v1543, %v1542
  %v1559 = vsel %vm963, %v1500, 0
  %1561 = vmatprep.subr.bf16.mxu0 0
  %1562 = vmatpush1.bf16.msra.mxu0 0
  %1563 = vmatprep.subr.bf16.mxu0 0
  %1564 = vmatpush1.bf16.msra.mxu0 %v1550
  %1565 = vmatprep.subr.bf16.mxu0 0
  %1566 = vmatpush1.bf16.msra.mxu0 %v1549
  %1567 = vmatprep.subr.bf16.mxu0 0
  %1568 = vmatpush1.bf16.msra.mxu0 %v1548
  %1569 = vmatprep.subr.bf16.mxu0 0
  %1570 = vmatpush1.bf16.msra.mxu0 %v1547
  %1571 = vmatprep.subr.bf16.mxu0 0
  %1572 = vmatpush1.bf16.msra.mxu0 %v1546
  %1573 = vmatprep.subr.bf16.mxu0 0
  %1574 = vmatpush1.bf16.msra.mxu0 %v1545
  %1575 = vmatprep.subr.bf16.mxu0 0
  %1576 = vmatpush1.bf16.msra.mxu0 %v1544
  %1577 = vmatprep.subr.bf16.mxu0 0
  %1578 = vmatpush2.bf16.msra.mxu0 0
  %1579 = vmatprep.subr.bf16.mxu0 0
  %1580 = vmatpush2.bf16.msra.mxu0 0
  %1581 = vmatprep.subr.bf16.mxu0 0
  %1582 = vmatpush2.bf16.msra.mxu0 0
  %1583 = vmatprep.subr.bf16.mxu0 0
  %1584 = vmatpush2.bf16.msra.mxu0 0
  %1585 = vmatprep.subr.bf16.mxu0 0
  %1586 = vmatpush2.bf16.msra.mxu0 0
  %1587 = vmatprep.subr.bf16.mxu0 0
  %1588 = vmatpush2.bf16.msra.mxu0 0
  %1589 = vmatprep.subr.bf16.mxu0 0
  %1590 = vmatpush2.bf16.msra.mxu0 0
  %1591 = vmatprep.subr.bf16.mxu0 0
  %1592 = vmatpush2.bf16.msra.mxu0 0
  %1593 = vmatprep.mubr.bf16.mxu0 0
  %1594 = vmatmul.mubr.bf16.gmra.mxu0 %v1559
  %v1595 = vpop.f32.mrf.mxu0
  %v1596 = vadd.f32 0.0, %v1595
  %v1597 = vpop.f32.mrf.mxu0
  %v1598 = vpop.f32.mrf.mxu0
  %v1599 = vpop.f32.mrf.mxu0
  %1600 = vdwg.mxu0
  %v1601 = vadd.f32 %v1499, %v1596
  %v1602 = vld [vmem:[%s6] sm:$0x1]
  %v1604 = vlaneseq
  %v1605 = vshrl.u32 %v1604, 7
  %v1606 = vsub.s32 0, %v1605
  %v1607 = vrot.slane %v1602, %v1606
  %v1609 = vadd.f32 %v1601, %v1607
  %1610 = vst [vmem:[%s7] sm:$0xff] %v1609
  // Predicated region
  $region30: #{feature_dsr_forward.1} parent=0 // pred_check
    _
  $region31: #{feature_dsr_forward.1} parent=0 // pred_check_branch
    %1612 = sbr.rel (0) target = $region33
  $region32: #{feature_dsr_forward.1} parent=0 // pred_region
    _
  $region33: #{feature_dsr_forward.1} parent=0 // pred_fallthru
    _
  // Predicated region
  $region34: #{feature_dsr_forward.1} parent=0 // pred_check
    _
  $region35: #{feature_dsr_forward.1} parent=0 // pred_check_branch
    %1614 = sbr.rel (0) target = $region37
  $region36: #{feature_dsr_forward.1} parent=0 // pred_region
    _
  $region37: #{feature_dsr_forward.1} parent=0 // pred_fallthru
    _

</llo_original>
